<compile_context>
chip_gen: v7x
topology: tpu7x:2x2x1
jax: 0.10.0
libtpu: 0.0.40
codegen_flags: <defaults>
</compile_context>

<pallas_src>
import functools

import jax
import jax.numpy as jnp
import numpy as np
from jax import lax
from jax.experimental import pallas as pl
from jax.experimental.pallas import tpu as pltpu


def _svo_kernel(x_ref,
                w_ih_ref, b_ih_ref,        # fused fwd+bwd input proj: (E,8H), (1,8H)
                w_hh_f_ref, w_hh_b_ref,    # hidden proj per direction: (H,4H)
                wm_ref, bm_ref, ws_ref, bs_ref, wp_ref, bp_ref,
                out_ref,
                gx_ref,                    # scratch: (T, B, 8H) precomputed input gates
                *, seq_len, hidden_size):
    """Bidirectional LSTM (fwd+bwd summed at t=0,1,2) + batched SSN head."""
    T = seq_len
    H = hidden_size
    H4 = 4 * H
    B = x_ref.shape[1]
    E = x_ref.shape[2]

    # ---- Hoisted input projection (both directions, one MXU call) ----------
    x2d = x_ref[...].reshape(T * B, E)
    gx = jnp.dot(x2d, w_ih_ref[...], preferred_element_type=jnp.float32) + b_ih_ref[...]
    gx_ref[...] = gx.reshape(T, B, 2 * H4)

    # ---- LSTM cell: gate order [i, f, o, g] (reordered at weight-prep) -----
    def cell(gx_t, h_prev, c_prev, w_hh):
        gates = gx_t + jnp.dot(h_prev, w_hh, preferred_element_type=jnp.float32)
        s = jax.nn.sigmoid(gates[:, :3 * H])          # i | f | o in one EUP pass
        i = s[:, :H]
        f = s[:, H:2 * H]
        o = s[:, 2 * H:3 * H]
        g = jnp.tanh(gates[:, 3 * H:])
        c_new = f * c_prev + i * g
        h_new = o * jnp.tanh(c_new)
        return h_new, c_new

    zeros = jnp.zeros((B, H), jnp.float32)
    w_hh_f = w_hh_f_ref[...]
    w_hh_b = w_hh_b_ref[...]

    # ---- Backward warm-up: t = T-1 .. 3, carry only (h, c) -----------------
    def bwd_body(s, carry):
        h, c = carry
        t = T - 1 - s
        gt = gx_ref[t]
        return cell(gt[:, H4:], h, c, w_hh_b)

    h_b, c_b = lax.fori_loop(0, T - 3, bwd_body, (zeros, zeros), unroll=True)

    # ---- Last 3 steps of both directions (fully static, interleavable) -----
    h_f, c_f = zeros, zeros
    fwd = [None, None, None]
    bwd = [None, None, None]
    for k in range(3):
        tf = k          # forward visits 0, 1, 2
        tb = 2 - k      # backward visits 2, 1, 0 (independent recurrence)
        gf = gx_ref[tf]
        gb = gx_ref[tb]
        h_f, c_f = cell(gf[:, :H4], h_f, c_f, w_hh_f)
        h_b, c_b = cell(gb[:, H4:], h_b, c_b, w_hh_b)
        fwd[tf] = h_f
        bwd[tb] = h_b

    o0 = fwd[0] + bwd[0]
    o1 = fwd[1] + bwd[1]
    o2 = fwd[2] + bwd[2]

    # ---- Batched SSN head ---------------------------------------------------
    slab = jnp.concatenate([o0, o1, o2], axis=0)                       # (3B, H)
    z = jnp.tanh(jnp.dot(slab, wm_ref[...],
                         preferred_element_type=jnp.float32) + bm_ref[...])
    z0 = z[:B]
    z1 = z[B:2 * B]
    z2 = z[2 * B:]
    m = jnp.concatenate([z0 * z1, z0 * z2, z1 * z2], axis=0)           # (3B, M)
    d = jnp.tanh(jnp.dot(m, ws_ref[...],
                         preferred_element_type=jnp.float32) + bs_ref[...])
    y = jax.nn.sigmoid(jnp.dot(d, wp_ref[...],
                               preferred_element_type=jnp.float32) + bp_ref[...])
    y01 = y[:B]
    y02 = y[B:2 * B]
    y12 = y[2 * B:]
    out_ref[...] = jnp.maximum(y12, jnp.maximum(y01, y02))


def svo_mismatch_degree(x, p):
    """x: (T, B, E) float32.  Returns (B, 1) float32."""
    T, B, E = x.shape
    H = p["w_hh_f"].shape[0]
    assert T >= 3, "SvoMismatchDegree needs at least 3 sequence positions"

    # Pad batch (sublane dim) to a multiple of 8 so carries/gates are full vregs.
    Bp = ((B + 7) // 8) * 8
    if Bp != B:
        x = jnp.pad(x, ((0, 0), (0, Bp - B), (0, 0)))

    # Reorder gate columns from PyTorch [i, f, g, o] -> [i, f, o, g] so the
    # kernel can sigmoid one contiguous 3H slice.  Applied consistently to
    # w_ih, w_hh and the folded bias (outside the kernel; one-time XLA work).
    def reorder(w):  # last dim is 4H
        return jnp.concatenate(
            [w[..., :2 * H], w[..., 3 * H:4 * H], w[..., 2 * H:3 * H]], axis=-1)

    w_ih = jnp.concatenate([reorder(p["w_ih_f"]), reorder(p["w_ih_b"])], axis=1)  # (E, 8H)
    b_ih = jnp.concatenate([reorder(p["b_f"]), reorder(p["b_b"])], axis=1)        # (1, 8H)
    w_hh_f = reorder(p["w_hh_f"])
    w_hh_b = reorder(p["w_hh_b"])

    kernel = functools.partial(_svo_kernel, seq_len=T, hidden_size=H)
    args = (x, w_ih, b_ih, w_hh_f, w_hh_b,
            p["wm"], p["bm"], p["ws"], p["bs"], p["wp"], p["bp"])

    vmem_spec = pl.BlockSpec(memory_space=pltpu.MemorySpace.VMEM)
    out = pl.pallas_call(
        kernel,
        out_shape=jax.ShapeDtypeStruct((Bp, 1), jnp.float32),
        in_specs=[vmem_spec] * len(args),
        out_specs=vmem_spec,
        scratch_shapes=[pltpu.VMEM((T, Bp, 8 * H), jnp.float32)],
    )(*args)
    return out[:B]


def init_params(key, E, H, M, D):
    """Deterministic synthetic parameters in kernel-friendly (transposed) layout.

    PyTorch shapes: weight_ih_l0 (4H,E), weight_hh_l0 (4H,H), biases (4H,);
    Linear weights (out,in).  We store the transposes and fold the two LSTM
    biases (b_ih + b_hh) into a single (1, 4H) row.  Gate order here is the
    PyTorch order [i, f, g, o]; the Pallas wrapper reorders for the kernel.
    """
    ks = jax.random.split(key, 12)
    u = lambda k, shape: jax.random.uniform(k, shape, jnp.float32, -0.1, 0.1)
    return {
        "w_ih_f": u(ks[0], (E, 4 * H)),
        "w_hh_f": u(ks[1], (H, 4 * H)),
        "b_f":    u(ks[2], (1, 4 * H)),
        "w_ih_b": u(ks[3], (E, 4 * H)),
        "w_hh_b": u(ks[4], (H, 4 * H)),
        "b_b":    u(ks[5], (1, 4 * H)),
        "wm":     u(ks[6], (H, M)),
        "bm":     u(ks[7], (1, M)),
        "ws":     u(ks[8], (M, D)),
        "bs":     u(ks[9], (1, D)),
        "wp":     u(ks[10], (D, 1)),
        "bp":     u(ks[11], (1, 1)),
    }


def reference_forward(x, p):
    """Pure-JAX reference mirroring the PyTorch module (eval mode)."""
    T, B, E = x.shape
    H = p["w_hh_f"].shape[0]

    def run_dir(w_ih, w_hh, b, reverse):
        h = jnp.zeros((B, H), jnp.float32)
        c = jnp.zeros((B, H), jnp.float32)
        outs = [None] * T
        ts = range(T - 1, -1, -1) if reverse else range(T)
        for t in ts:
            gates = x[t] @ w_ih + h @ w_hh + b
            i = jax.nn.sigmoid(gates[:, :H])
            f = jax.nn.sigmoid(gates[:, H:2 * H])
            g = jnp.tanh(gates[:, 2 * H:3 * H])
            o = jax.nn.sigmoid(gates[:, 3 * H:])
            c = f * c + i * g
            h = o * jnp.tanh(c)
            outs[t] = h
        return jnp.stack(outs)

    outs = (run_dir(p["w_ih_f"], p["w_hh_f"], p["b_f"], False)
            + run_dir(p["w_ih_b"], p["w_hh_b"], p["b_b"], True))

    def ssn(x1, x2):
        z1 = jnp.tanh(x1 @ p["wm"] + p["bm"])
        z2 = jnp.tanh(x2 @ p["wm"] + p["bm"])
        d = jnp.tanh((z1 * z2) @ p["ws"] + p["bs"])
        return jax.nn.sigmoid(d @ p["wp"] + p["bp"])

    y1 = ssn(outs[0], outs[1])
    y2 = ssn(outs[0], outs[2])
    y3 = ssn(outs[1], outs[2])
    return jnp.maximum(y3, jnp.maximum(y1, y2))


if __name__ == "__main__":
    # Small shapes consistent with the module: seq=8 (>=3 required), batch=4,
    # embedding_size=32, hidden_size=32, metaphor_size=16, d_size=8.
    T, B, E, H, M, D = 8, 4, 32, 32, 16, 8

    key = jax.random.PRNGKey(0)
    k_x, k_p = jax.random.split(key)
    x = jax.random.normal(k_x, (T, B, E), jnp.float32)
    params = init_params(k_p, E, H, M, D)

    # TODO(synk): dropout layers are identity (eval mode); train-time dropout
    # masks are not implemented in-kernel.
    out = svo_mismatch_degree(x, params)
    out = jax.block_until_ready(out)

    assert out.shape == (B, 1)
    ref = reference_forward(x, params)
    np.testing.assert_allclose(np.asarray(out), np.asarray(ref),
                               atol=2e-2, rtol=2e-2)
    print("KERNEL_OK")
</pallas_src>

<mosaic_0001>
module attributes {stable_mosaic.version = 11 : i64} {
  func.func @_svo_kernel(%arg0: memref<8x8x32xf32, #tpu.memory_space<vmem>>, %arg1: memref<32x256xf32, #tpu.memory_space<vmem>>, %arg2: memref<1x256xf32, #tpu.memory_space<vmem>>, %arg3: memref<32x128xf32, #tpu.memory_space<vmem>>, %arg4: memref<32x128xf32, #tpu.memory_space<vmem>>, %arg5: memref<32x16xf32, #tpu.memory_space<vmem>>, %arg6: memref<1x16xf32, #tpu.memory_space<vmem>>, %arg7: memref<16x8xf32, #tpu.memory_space<vmem>>, %arg8: memref<1x8xf32, #tpu.memory_space<vmem>>, %arg9: memref<8x1xf32, #tpu.memory_space<vmem>>, %arg10: memref<1x1xf32, #tpu.memory_space<vmem>>, %arg11: memref<8x1xf32, #tpu.memory_space<vmem>>, %arg12: memref<8x8x256xf32, #tpu.memory_space<vmem>>) attributes {dimension_semantics = [], scalar_prefetch = 0 : i64, scratch_operands = 1 : i64, tpu.core_type = #tpu.core_type<tc>} {
    %c0 = arith.constant 0 : index
    %c0_0 = arith.constant 0 : index
    %c0_1 = arith.constant 0 : index
    %0 = vector.load %arg0[%c0, %c0_0, %c0_1] : memref<8x8x32xf32, #tpu.memory_space<vmem>>, vector<8x8x32xf32>
    %1 = vector.shape_cast %0 : vector<8x8x32xf32> to vector<64x32xf32>
    %c0_2 = arith.constant 0 : index
    %c0_3 = arith.constant 0 : index
    %2 = vector.load %arg1[%c0_2, %c0_3] : memref<32x256xf32, #tpu.memory_space<vmem>>, vector<32x256xf32>
    %cst = arith.constant dense<0.000000e+00> : vector<64x256xf32>
    %3 = tpu.matmul %1, %2, %cst {dimension_numbers = #tpu.dot_dimension_numbers<[1], [0], [0], [1], [0, 0, 1, 1], [], []>} : vector<64x32xf32>, vector<32x256xf32>, vector<64x256xf32> -> vector<64x256xf32>
    %c0_4 = arith.constant 0 : index
    %c0_5 = arith.constant 0 : index
    %4 = vector.load %arg2[%c0_4, %c0_5] : memref<1x256xf32, #tpu.memory_space<vmem>>, vector<1x256xf32>
    %5 = vector.broadcast %4 : vector<1x256xf32> to vector<64x256xf32>
    %6 = arith.addf %3, %5 : vector<64x256xf32>
    %7 = vector.shape_cast %6 : vector<64x256xf32> to vector<8x8x256xf32>
    %c0_6 = arith.constant 0 : index
    %c0_7 = arith.constant 0 : index
    %c0_8 = arith.constant 0 : index
    %8 = vector.load %arg12[%c0_6, %c0_7, %c0_8] : memref<8x8x256xf32, #tpu.memory_space<vmem>>, vector<8x8x256xf32>
    tpu.vector_store %arg12[%c0_6, %c0_7, %c0_8], %7 {strides = array<i32>} : memref<8x8x256xf32, #tpu.memory_space<vmem>>, vector<8x8x256xf32>,
    %cst_9 = arith.constant 0.000000e+00 : f32
    %9 = vector.broadcast %cst_9 : f32 to vector<8x32xf32>
    %c0_10 = arith.constant 0 : index
    %c0_11 = arith.constant 0 : index
    %10 = vector.load %arg3[%c0_10, %c0_11] : memref<32x128xf32, #tpu.memory_space<vmem>>, vector<32x128xf32>
    %c0_12 = arith.constant 0 : index
    %c0_13 = arith.constant 0 : index
    %11 = vector.load %arg4[%c0_12, %c0_13] : memref<32x128xf32, #tpu.memory_space<vmem>>, vector<32x128xf32>
    %c0_i32 = arith.constant 0 : i32
    %c7_i32 = arith.constant 7 : i32
    %12 = arith.subi %c7_i32, %c0_i32 : i32
    %13 = arith.index_cast %12 : i32 to index
    %c0_14 = arith.constant 0 : index
    %c0_15 = arith.constant 0 : index
    %14 = vector.load %arg12[%13, %c0_14, %c0_15] : memref<8x8x256xf32, #tpu.memory_space<vmem>>, vector<1x8x256xf32>
    %15 = vector.shape_cast %14 : vector<1x8x256xf32> to vector<8x256xf32>
    %16 = vector.extract_strided_slice %15 {offsets = [0, 128], sizes = [8, 128], strides = [1, 1]} : vector<8x256xf32> to vector<8x128xf32>
    %cst_16 = arith.constant dense<0.000000e+00> : vector<8x128xf32>
    %17 = tpu.matmul %9, %11, %cst_16 {dimension_numbers = #tpu.dot_dimension_numbers<[1], [0], [0], [1], [0, 0, 1, 1], [], []>} : vector<8x32xf32>, vector<32x128xf32>, vector<8x128xf32> -> vector<8x128xf32>
    %18 = arith.addf %16, %17 : vector<8x128xf32>
    %19 = vector.extract_strided_slice %18 {offsets = [0, 0], sizes = [8, 96], strides = [1, 1]} : vector<8x128xf32> to vector<8x96xf32>
    %20 = arith.negf %19 : vector<8x96xf32>
    %21 = math.exp %20 : vector<8x96xf32>
    %cst_17 = arith.constant 1.000000e+00 : f32
    %22 = vector.broadcast %cst_17 : f32 to vector<8x96xf32>
    %23 = arith.addf %22, %21 : vector<8x96xf32>
    %24 = arith.divf %22, %23 : vector<8x96xf32>
    %25 = vector.extract_strided_slice %24 {offsets = [0, 0], sizes = [8, 32], strides = [1, 1]} : vector<8x96xf32> to vector<8x32xf32>
    %26 = vector.extract_strided_slice %24 {offsets = [0, 32], sizes = [8, 32], strides = [1, 1]} : vector<8x96xf32> to vector<8x32xf32>
    %27 = vector.extract_strided_slice %24 {offsets = [0, 64], sizes = [8, 32], strides = [1, 1]} : vector<8x96xf32> to vector<8x32xf32>
    %28 = vector.extract_strided_slice %18 {offsets = [0, 96], sizes = [8, 32], strides = [1, 1]} : vector<8x128xf32> to vector<8x32xf32>
    %29 = math.tanh %28 : vector<8x32xf32>
    %30 = arith.mulf %26, %9 : vector<8x32xf32>
    %31 = arith.mulf %25, %29 : vector<8x32xf32>
    %32 = arith.addf %30, %31 : vector<8x32xf32>
    %33 = math.tanh %32 : vector<8x32xf32>
    %34 = arith.mulf %27, %33 : vector<8x32xf32>
    %c1_i32 = arith.constant 1 : i32
    %c7_i32_18 = arith.constant 7 : i32
    %35 = arith.subi %c7_i32_18, %c1_i32 : i32
    %36 = arith.index_cast %35 : i32 to index
    %c0_19 = arith.constant 0 : index
    %c0_20 = arith.constant 0 : index
    %37 = vector.load %arg12[%36, %c0_19, %c0_20] : memref<8x8x256xf32, #tpu.memory_space<vmem>>, vector<1x8x256xf32>
    %38 = vector.shape_cast %37 : vector<1x8x256xf32> to vector<8x256xf32>
    %39 = vector.extract_strided_slice %38 {offsets = [0, 128], sizes = [8, 128], strides = [1, 1]} : vector<8x256xf32> to vector<8x128xf32>
    %cst_21 = arith.constant dense<0.000000e+00> : vector<8x128xf32>
    %40 = tpu.matmul %34, %11, %cst_21 {dimension_numbers = #tpu.dot_dimension_numbers<[1], [0], [0], [1], [0, 0, 1, 1], [], []>} : vector<8x32xf32>, vector<32x128xf32>, vector<8x128xf32> -> vector<8x128xf32>
    %41 = arith.addf %39, %40 : vector<8x128xf32>
    %42 = vector.extract_strided_slice %41 {offsets = [0, 0], sizes = [8, 96], strides = [1, 1]} : vector<8x128xf32> to vector<8x96xf32>
    %43 = arith.negf %42 : vector<8x96xf32>
    %44 = math.exp %43 : vector<8x96xf32>
    %cst_22 = arith.constant 1.000000e+00 : f32
    %45 = vector.broadcast %cst_22 : f32 to vector<8x96xf32>
    %46 = arith.addf %45, %44 : vector<8x96xf32>
    %47 = arith.divf %45, %46 : vector<8x96xf32>
    %48 = vector.extract_strided_slice %47 {offsets = [0, 0], sizes = [8, 32], strides = [1, 1]} : vector<8x96xf32> to vector<8x32xf32>
    %49 = vector.extract_strided_slice %47 {offsets = [0, 32], sizes = [8, 32], strides = [1, 1]} : vector<8x96xf32> to vector<8x32xf32>
    %50 = vector.extract_strided_slice %47 {offsets = [0, 64], sizes = [8, 32], strides = [1, 1]} : vector<8x96xf32> to vector<8x32xf32>
    %51 = vector.extract_strided_slice %41 {offsets = [0, 96], sizes = [8, 32], strides = [1, 1]} : vector<8x128xf32> to vector<8x32xf32>
    %52 = math.tanh %51 : vector<8x32xf32>
    %53 = arith.mulf %49, %32 : vector<8x32xf32>
    %54 = arith.mulf %48, %52 : vector<8x32xf32>
    %55 = arith.addf %53, %54 : vector<8x32xf32>
    %56 = math.tanh %55 : vector<8x32xf32>
    %57 = arith.mulf %50, %56 : vector<8x32xf32>
    %c2_i32 = arith.constant 2 : i32
    %c7_i32_23 = arith.constant 7 : i32
    %58 = arith.subi %c7_i32_23, %c2_i32 : i32
    %59 = arith.index_cast %58 : i32 to index
    %c0_24 = arith.constant 0 : index
    %c0_25 = arith.constant 0 : index
    %60 = vector.load %arg12[%59, %c0_24, %c0_25] : memref<8x8x256xf32, #tpu.memory_space<vmem>>, vector<1x8x256xf32>
    %61 = vector.shape_cast %60 : vector<1x8x256xf32> to vector<8x256xf32>
    %62 = vector.extract_strided_slice %61 {offsets = [0, 128], sizes = [8, 128], strides = [1, 1]} : vector<8x256xf32> to vector<8x128xf32>
    %cst_26 = arith.constant dense<0.000000e+00> : vector<8x128xf32>
    %63 = tpu.matmul %57, %11, %cst_26 {dimension_numbers = #tpu.dot_dimension_numbers<[1], [0], [0], [1], [0, 0, 1, 1], [], []>} : vector<8x32xf32>, vector<32x128xf32>, vector<8x128xf32> -> vector<8x128xf32>
    %64 = arith.addf %62, %63 : vector<8x128xf32>
    %65 = vector.extract_strided_slice %64 {offsets = [0, 0], sizes = [8, 96], strides = [1, 1]} : vector<8x128xf32> to vector<8x96xf32>
    %66 = arith.negf %65 : vector<8x96xf32>
    %67 = math.exp %66 : vector<8x96xf32>
    %cst_27 = arith.constant 1.000000e+00 : f32
    %68 = vector.broadcast %cst_27 : f32 to vector<8x96xf32>
    %69 = arith.addf %68, %67 : vector<8x96xf32>
    %70 = arith.divf %68, %69 : vector<8x96xf32>
    %71 = vector.extract_strided_slice %70 {offsets = [0, 0], sizes = [8, 32], strides = [1, 1]} : vector<8x96xf32> to vector<8x32xf32>
    %72 = vector.extract_strided_slice %70 {offsets = [0, 32], sizes = [8, 32], strides = [1, 1]} : vector<8x96xf32> to vector<8x32xf32>
    %73 = vector.extract_strided_slice %70 {offsets = [0, 64], sizes = [8, 32], strides = [1, 1]} : vector<8x96xf32> to vector<8x32xf32>
    %74 = vector.extract_strided_slice %64 {offsets = [0, 96], sizes = [8, 32], strides = [1, 1]} : vector<8x128xf32> to vector<8x32xf32>
    %75 = math.tanh %74 : vector<8x32xf32>
    %76 = arith.mulf %72, %55 : vector<8x32xf32>
    %77 = arith.mulf %71, %75 : vector<8x32xf32>
    %78 = arith.addf %76, %77 : vector<8x32xf32>
    %79 = math.tanh %78 : vector<8x32xf32>
    %80 = arith.mulf %73, %79 : vector<8x32xf32>
    %c3_i32 = arith.constant 3 : i32
    %c7_i32_28 = arith.constant 7 : i32
    %81 = arith.subi %c7_i32_28, %c3_i32 : i32
    %82 = arith.index_cast %81 : i32 to index
    %c0_29 = arith.constant 0 : index
    %c0_30 = arith.constant 0 : index
    %83 = vector.load %arg12[%82, %c0_29, %c0_30] : memref<8x8x256xf32, #tpu.memory_space<vmem>>, vector<1x8x256xf32>
    %84 = vector.shape_cast %83 : vector<1x8x256xf32> to vector<8x256xf32>
    %85 = vector.extract_strided_slice %84 {offsets = [0, 128], sizes = [8, 128], strides = [1, 1]} : vector<8x256xf32> to vector<8x128xf32>
    %cst_31 = arith.constant dense<0.000000e+00> : vector<8x128xf32>
    %86 = tpu.matmul %80, %11, %cst_31 {dimension_numbers = #tpu.dot_dimension_numbers<[1], [0], [0], [1], [0, 0, 1, 1], [], []>} : vector<8x32xf32>, vector<32x128xf32>, vector<8x128xf32> -> vector<8x128xf32>
    %87 = arith.addf %85, %86 : vector<8x128xf32>
    %88 = vector.extract_strided_slice %87 {offsets = [0, 0], sizes = [8, 96], strides = [1, 1]} : vector<8x128xf32> to vector<8x96xf32>
    %89 = arith.negf %88 : vector<8x96xf32>
    %90 = math.exp %89 : vector<8x96xf32>
    %cst_32 = arith.constant 1.000000e+00 : f32
    %91 = vector.broadcast %cst_32 : f32 to vector<8x96xf32>
    %92 = arith.addf %91, %90 : vector<8x96xf32>
    %93 = arith.divf %91, %92 : vector<8x96xf32>
    %94 = vector.extract_strided_slice %93 {offsets = [0, 0], sizes = [8, 32], strides = [1, 1]} : vector<8x96xf32> to vector<8x32xf32>
    %95 = vector.extract_strided_slice %93 {offsets = [0, 32], sizes = [8, 32], strides = [1, 1]} : vector<8x96xf32> to vector<8x32xf32>
    %96 = vector.extract_strided_slice %93 {offsets = [0, 64], sizes = [8, 32], strides = [1, 1]} : vector<8x96xf32> to vector<8x32xf32>
    %97 = vector.extract_strided_slice %87 {offsets = [0, 96], sizes = [8, 32], strides = [1, 1]} : vector<8x128xf32> to vector<8x32xf32>
    %98 = math.tanh %97 : vector<8x32xf32>
    %99 = arith.mulf %95, %78 : vector<8x32xf32>
    %100 = arith.mulf %94, %98 : vector<8x32xf32>
    %101 = arith.addf %99, %100 : vector<8x32xf32>
    %102 = math.tanh %101 : vector<8x32xf32>
    %103 = arith.mulf %96, %102 : vector<8x32xf32>
    %c4_i32 = arith.constant 4 : i32
    %c7_i32_33 = arith.constant 7 : i32
    %104 = arith.subi %c7_i32_33, %c4_i32 : i32
    %105 = arith.index_cast %104 : i32 to index
    %c0_34 = arith.constant 0 : index
    %c0_35 = arith.constant 0 : index
    %106 = vector.load %arg12[%105, %c0_34, %c0_35] : memref<8x8x256xf32, #tpu.memory_space<vmem>>, vector<1x8x256xf32>
    %107 = vector.shape_cast %106 : vector<1x8x256xf32> to vector<8x256xf32>
    %108 = vector.extract_strided_slice %107 {offsets = [0, 128], sizes = [8, 128], strides = [1, 1]} : vector<8x256xf32> to vector<8x128xf32>
    %cst_36 = arith.constant dense<0.000000e+00> : vector<8x128xf32>
    %109 = tpu.matmul %103, %11, %cst_36 {dimension_numbers = #tpu.dot_dimension_numbers<[1], [0], [0], [1], [0, 0, 1, 1], [], []>} : vector<8x32xf32>, vector<32x128xf32>, vector<8x128xf32> -> vector<8x128xf32>
    %110 = arith.addf %108, %109 : vector<8x128xf32>
    %111 = vector.extract_strided_slice %110 {offsets = [0, 0], sizes = [8, 96], strides = [1, 1]} : vector<8x128xf32> to vector<8x96xf32>
    %112 = arith.negf %111 : vector<8x96xf32>
    %113 = math.exp %112 : vector<8x96xf32>
    %cst_37 = arith.constant 1.000000e+00 : f32
    %114 = vector.broadcast %cst_37 : f32 to vector<8x96xf32>
    %115 = arith.addf %114, %113 : vector<8x96xf32>
    %116 = arith.divf %114, %115 : vector<8x96xf32>
    %117 = vector.extract_strided_slice %116 {offsets = [0, 0], sizes = [8, 32], strides = [1, 1]} : vector<8x96xf32> to vector<8x32xf32>
    %118 = vector.extract_strided_slice %116 {offsets = [0, 32], sizes = [8, 32], strides = [1, 1]} : vector<8x96xf32> to vector<8x32xf32>
    %119 = vector.extract_strided_slice %116 {offsets = [0, 64], sizes = [8, 32], strides = [1, 1]} : vector<8x96xf32> to vector<8x32xf32>
    %120 = vector.extract_strided_slice %110 {offsets = [0, 96], sizes = [8, 32], strides = [1, 1]} : vector<8x128xf32> to vector<8x32xf32>
    %121 = math.tanh %120 : vector<8x32xf32>
    %122 = arith.mulf %118, %101 : vector<8x32xf32>
    %123 = arith.mulf %117, %121 : vector<8x32xf32>
    %124 = arith.addf %122, %123 : vector<8x32xf32>
    %125 = math.tanh %124 : vector<8x32xf32>
    %126 = arith.mulf %119, %125 : vector<8x32xf32>
    %c5_i32 = arith.constant 5 : i32
    %c0_38 = arith.constant 0 : index
    %c0_39 = arith.constant 0 : index
    %c0_40 = arith.constant 0 : index
    %127 = vector.load %arg12[%c0_38, %c0_39, %c0_40] : memref<8x8x256xf32, #tpu.memory_space<vmem>>, vector<1x8x256xf32>
    %128 = vector.shape_cast %127 : vector<1x8x256xf32> to vector<8x256xf32>
    %c2 = arith.constant 2 : index
    %c0_41 = arith.constant 0 : index
    %c0_42 = arith.constant 0 : index
    %129 = vector.load %arg12[%c2, %c0_41, %c0_42] : memref<8x8x256xf32, #tpu.memory_space<vmem>>, vector<1x8x256xf32>
    %130 = vector.shape_cast %129 : vector<1x8x256xf32> to vector<8x256xf32>
    %131 = vector.extract_strided_slice %128 {offsets = [0, 0], sizes = [8, 128], strides = [1, 1]} : vector<8x256xf32> to vector<8x128xf32>
    %cst_43 = arith.constant dense<0.000000e+00> : vector<8x128xf32>
    %132 = tpu.matmul %9, %10, %cst_43 {dimension_numbers = #tpu.dot_dimension_numbers<[1], [0], [0], [1], [0, 0, 1, 1], [], []>} : vector<8x32xf32>, vector<32x128xf32>, vector<8x128xf32> -> vector<8x128xf32>
    %133 = arith.addf %131, %132 : vector<8x128xf32>
    %134 = vector.extract_strided_slice %133 {offsets = [0, 0], sizes = [8, 96], strides = [1, 1]} : vector<8x128xf32> to vector<8x96xf32>
    %135 = arith.negf %134 : vector<8x96xf32>
    %136 = math.exp %135 : vector<8x96xf32>
    %cst_44 = arith.constant 1.000000e+00 : f32
    %137 = vector.broadcast %cst_44 : f32 to vector<8x96xf32>
    %138 = arith.addf %137, %136 : vector<8x96xf32>
    %139 = arith.divf %137, %138 : vector<8x96xf32>
    %140 = vector.extract_strided_slice %139 {offsets = [0, 0], sizes = [8, 32], strides = [1, 1]} : vector<8x96xf32> to vector<8x32xf32>
    %141 = vector.extract_strided_slice %139 {offsets = [0, 32], sizes = [8, 32], strides = [1, 1]} : vector<8x96xf32> to vector<8x32xf32>
    %142 = vector.extract_strided_slice %139 {offsets = [0, 64], sizes = [8, 32], strides = [1, 1]} : vector<8x96xf32> to vector<8x32xf32>
    %143 = vector.extract_strided_slice %133 {offsets = [0, 96], sizes = [8, 32], strides = [1, 1]} : vector<8x128xf32> to vector<8x32xf32>
    %144 = math.tanh %143 : vector<8x32xf32>
    %145 = arith.mulf %141, %9 : vector<8x32xf32>
    %146 = arith.mulf %140, %144 : vector<8x32xf32>
    %147 = arith.addf %145, %146 : vector<8x32xf32>
    %148 = math.tanh %147 : vector<8x32xf32>
    %149 = arith.mulf %142, %148 : vector<8x32xf32>
    %150 = vector.extract_strided_slice %130 {offsets = [0, 128], sizes = [8, 128], strides = [1, 1]} : vector<8x256xf32> to vector<8x128xf32>
    %cst_45 = arith.constant dense<0.000000e+00> : vector<8x128xf32>
    %151 = tpu.matmul %126, %11, %cst_45 {dimension_numbers = #tpu.dot_dimension_numbers<[1], [0], [0], [1], [0, 0, 1, 1], [], []>} : vector<8x32xf32>, vector<32x128xf32>, vector<8x128xf32> -> vector<8x128xf32>
    %152 = arith.addf %150, %151 : vector<8x128xf32>
    %153 = vector.extract_strided_slice %152 {offsets = [0, 0], sizes = [8, 96], strides = [1, 1]} : vector<8x128xf32> to vector<8x96xf32>
    %154 = arith.negf %153 : vector<8x96xf32>
    %155 = math.exp %154 : vector<8x96xf32>
    %cst_46 = arith.constant 1.000000e+00 : f32
    %156 = vector.broadcast %cst_46 : f32 to vector<8x96xf32>
    %157 = arith.addf %156, %155 : vector<8x96xf32>
    %158 = arith.divf %156, %157 : vector<8x96xf32>
    %159 = vector.extract_strided_slice %158 {offsets = [0, 0], sizes = [8, 32], strides = [1, 1]} : vector<8x96xf32> to vector<8x32xf32>
    %160 = vector.extract_strided_slice %158 {offsets = [0, 32], sizes = [8, 32], strides = [1, 1]} : vector<8x96xf32> to vector<8x32xf32>
    %161 = vector.extract_strided_slice %158 {offsets = [0, 64], sizes = [8, 32], strides = [1, 1]} : vector<8x96xf32> to vector<8x32xf32>
    %162 = vector.extract_strided_slice %152 {offsets = [0, 96], sizes = [8, 32], strides = [1, 1]} : vector<8x128xf32> to vector<8x32xf32>
    %163 = math.tanh %162 : vector<8x32xf32>
    %164 = arith.mulf %160, %124 : vector<8x32xf32>
    %165 = arith.mulf %159, %163 : vector<8x32xf32>
    %166 = arith.addf %164, %165 : vector<8x32xf32>
    %167 = math.tanh %166 : vector<8x32xf32>
    %168 = arith.mulf %161, %167 : vector<8x32xf32>
    %c1 = arith.constant 1 : index
    %c0_47 = arith.constant 0 : index
    %c0_48 = arith.constant 0 : index
    %169 = vector.load %arg12[%c1, %c0_47, %c0_48] : memref<8x8x256xf32, #tpu.memory_space<vmem>>, vector<1x8x256xf32>
    %170 = vector.shape_cast %169 : vector<1x8x256xf32> to vector<8x256xf32>
    %c1_49 = arith.constant 1 : index
    %c0_50 = arith.constant 0 : index
    %c0_51 = arith.constant 0 : index
    %171 = vector.load %arg12[%c1_49, %c0_50, %c0_51] : memref<8x8x256xf32, #tpu.memory_space<vmem>>, vector<1x8x256xf32>
    %172 = vector.shape_cast %171 : vector<1x8x256xf32> to vector<8x256xf32>
    %173 = vector.extract_strided_slice %170 {offsets = [0, 0], sizes = [8, 128], strides = [1, 1]} : vector<8x256xf32> to vector<8x128xf32>
    %cst_52 = arith.constant dense<0.000000e+00> : vector<8x128xf32>
    %174 = tpu.matmul %149, %10, %cst_52 {dimension_numbers = #tpu.dot_dimension_numbers<[1], [0], [0], [1], [0, 0, 1, 1], [], []>} : vector<8x32xf32>, vector<32x128xf32>, vector<8x128xf32> -> vector<8x128xf32>
    %175 = arith.addf %173, %174 : vector<8x128xf32>
    %176 = vector.extract_strided_slice %175 {offsets = [0, 0], sizes = [8, 96], strides = [1, 1]} : vector<8x128xf32> to vector<8x96xf32>
    %177 = arith.negf %176 : vector<8x96xf32>
    %178 = math.exp %177 : vector<8x96xf32>
    %cst_53 = arith.constant 1.000000e+00 : f32
    %179 = vector.broadcast %cst_53 : f32 to vector<8x96xf32>
    %180 = arith.addf %179, %178 : vector<8x96xf32>
    %181 = arith.divf %179, %180 : vector<8x96xf32>
    %182 = vector.extract_strided_slice %181 {offsets = [0, 0], sizes = [8, 32], strides = [1, 1]} : vector<8x96xf32> to vector<8x32xf32>
    %183 = vector.extract_strided_slice %181 {offsets = [0, 32], sizes = [8, 32], strides = [1, 1]} : vector<8x96xf32> to vector<8x32xf32>
    %184 = vector.extract_strided_slice %181 {offsets = [0, 64], sizes = [8, 32], strides = [1, 1]} : vector<8x96xf32> to vector<8x32xf32>
    %185 = vector.extract_strided_slice %175 {offsets = [0, 96], sizes = [8, 32], strides = [1, 1]} : vector<8x128xf32> to vector<8x32xf32>
    %186 = math.tanh %185 : vector<8x32xf32>
    %187 = arith.mulf %183, %147 : vector<8x32xf32>
    %188 = arith.mulf %182, %186 : vector<8x32xf32>
    %189 = arith.addf %187, %188 : vector<8x32xf32>
    %190 = math.tanh %189 : vector<8x32xf32>
    %191 = arith.mulf %184, %190 : vector<8x32xf32>
    %192 = vector.extract_strided_slice %172 {offsets = [0, 128], sizes = [8, 128], strides = [1, 1]} : vector<8x256xf32> to vector<8x128xf32>
    %cst_54 = arith.constant dense<0.000000e+00> : vector<8x128xf32>
    %193 = tpu.matmul %168, %11, %cst_54 {dimension_numbers = #tpu.dot_dimension_numbers<[1], [0], [0], [1], [0, 0, 1, 1], [], []>} : vector<8x32xf32>, vector<32x128xf32>, vector<8x128xf32> -> vector<8x128xf32>
    %194 = arith.addf %192, %193 : vector<8x128xf32>
    %195 = vector.extract_strided_slice %194 {offsets = [0, 0], sizes = [8, 96], strides = [1, 1]} : vector<8x128xf32> to vector<8x96xf32>
    %196 = arith.negf %195 : vector<8x96xf32>
    %197 = math.exp %196 : vector<8x96xf32>
    %cst_55 = arith.constant 1.000000e+00 : f32
    %198 = vector.broadcast %cst_55 : f32 to vector<8x96xf32>
    %199 = arith.addf %198, %197 : vector<8x96xf32>
    %200 = arith.divf %198, %199 : vector<8x96xf32>
    %201 = vector.extract_strided_slice %200 {offsets = [0, 0], sizes = [8, 32], strides = [1, 1]} : vector<8x96xf32> to vector<8x32xf32>
    %202 = vector.extract_strided_slice %200 {offsets = [0, 32], sizes = [8, 32], strides = [1, 1]} : vector<8x96xf32> to vector<8x32xf32>
    %203 = vector.extract_strided_slice %200 {offsets = [0, 64], sizes = [8, 32], strides = [1, 1]} : vector<8x96xf32> to vector<8x32xf32>
    %204 = vector.extract_strided_slice %194 {offsets = [0, 96], sizes = [8, 32], strides = [1, 1]} : vector<8x128xf32> to vector<8x32xf32>
    %205 = math.tanh %204 : vector<8x32xf32>
    %206 = arith.mulf %202, %166 : vector<8x32xf32>
    %207 = arith.mulf %201, %205 : vector<8x32xf32>
    %208 = arith.addf %206, %207 : vector<8x32xf32>
    %209 = math.tanh %208 : vector<8x32xf32>
    %210 = arith.mulf %203, %209 : vector<8x32xf32>
    %c2_56 = arith.constant 2 : index
    %c0_57 = arith.constant 0 : index
    %c0_58 = arith.constant 0 : index
    %211 = vector.load %arg12[%c2_56, %c0_57, %c0_58] : memref<8x8x256xf32, #tpu.memory_space<vmem>>, vector<1x8x256xf32>
    %212 = vector.shape_cast %211 : vector<1x8x256xf32> to vector<8x256xf32>
    %c0_59 = arith.constant 0 : index
    %c0_60 = arith.constant 0 : index
    %c0_61 = arith.constant 0 : index
    %213 = vector.load %arg12[%c0_59, %c0_60, %c0_61] : memref<8x8x256xf32, #tpu.memory_space<vmem>>, vector<1x8x256xf32>
    %214 = vector.shape_cast %213 : vector<1x8x256xf32> to vector<8x256xf32>
    %215 = vector.extract_strided_slice %212 {offsets = [0, 0], sizes = [8, 128], strides = [1, 1]} : vector<8x256xf32> to vector<8x128xf32>
    %cst_62 = arith.constant dense<0.000000e+00> : vector<8x128xf32>
    %216 = tpu.matmul %191, %10, %cst_62 {dimension_numbers = #tpu.dot_dimension_numbers<[1], [0], [0], [1], [0, 0, 1, 1], [], []>} : vector<8x32xf32>, vector<32x128xf32>, vector<8x128xf32> -> vector<8x128xf32>
    %217 = arith.addf %215, %216 : vector<8x128xf32>
    %218 = vector.extract_strided_slice %217 {offsets = [0, 0], sizes = [8, 96], strides = [1, 1]} : vector<8x128xf32> to vector<8x96xf32>
    %219 = arith.negf %218 : vector<8x96xf32>
    %220 = math.exp %219 : vector<8x96xf32>
    %cst_63 = arith.constant 1.000000e+00 : f32
    %221 = vector.broadcast %cst_63 : f32 to vector<8x96xf32>
    %222 = arith.addf %221, %220 : vector<8x96xf32>
    %223 = arith.divf %221, %222 : vector<8x96xf32>
    %224 = vector.extract_strided_slice %223 {offsets = [0, 0], sizes = [8, 32], strides = [1, 1]} : vector<8x96xf32> to vector<8x32xf32>
    %225 = vector.extract_strided_slice %223 {offsets = [0, 32], sizes = [8, 32], strides = [1, 1]} : vector<8x96xf32> to vector<8x32xf32>
    %226 = vector.extract_strided_slice %223 {offsets = [0, 64], sizes = [8, 32], strides = [1, 1]} : vector<8x96xf32> to vector<8x32xf32>
    %227 = vector.extract_strided_slice %217 {offsets = [0, 96], sizes = [8, 32], strides = [1, 1]} : vector<8x128xf32> to vector<8x32xf32>
    %228 = math.tanh %227 : vector<8x32xf32>
    %229 = arith.mulf %225, %189 : vector<8x32xf32>
    %230 = arith.mulf %224, %228 : vector<8x32xf32>
    %231 = arith.addf %229, %230 : vector<8x32xf32>
    %232 = math.tanh %231 : vector<8x32xf32>
    %233 = arith.mulf %226, %232 : vector<8x32xf32>
    %234 = vector.extract_strided_slice %214 {offsets = [0, 128], sizes = [8, 128], strides = [1, 1]} : vector<8x256xf32> to vector<8x128xf32>
    %cst_64 = arith.constant dense<0.000000e+00> : vector<8x128xf32>
    %235 = tpu.matmul %210, %11, %cst_64 {dimension_numbers = #tpu.dot_dimension_numbers<[1], [0], [0], [1], [0, 0, 1, 1], [], []>} : vector<8x32xf32>, vector<32x128xf32>, vector<8x128xf32> -> vector<8x128xf32>
    %236 = arith.addf %234, %235 : vector<8x128xf32>
    %237 = vector.extract_strided_slice %236 {offsets = [0, 0], sizes = [8, 96], strides = [1, 1]} : vector<8x128xf32> to vector<8x96xf32>
    %238 = arith.negf %237 : vector<8x96xf32>
    %239 = math.exp %238 : vector<8x96xf32>
    %cst_65 = arith.constant 1.000000e+00 : f32
    %240 = vector.broadcast %cst_65 : f32 to vector<8x96xf32>
    %241 = arith.addf %240, %239 : vector<8x96xf32>
    %242 = arith.divf %240, %241 : vector<8x96xf32>
    %243 = vector.extract_strided_slice %242 {offsets = [0, 0], sizes = [8, 32], strides = [1, 1]} : vector<8x96xf32> to vector<8x32xf32>
    %244 = vector.extract_strided_slice %242 {offsets = [0, 32], sizes = [8, 32], strides = [1, 1]} : vector<8x96xf32> to vector<8x32xf32>
    %245 = vector.extract_strided_slice %242 {offsets = [0, 64], sizes = [8, 32], strides = [1, 1]} : vector<8x96xf32> to vector<8x32xf32>
    %246 = vector.extract_strided_slice %236 {offsets = [0, 96], sizes = [8, 32], strides = [1, 1]} : vector<8x128xf32> to vector<8x32xf32>
    %247 = math.tanh %246 : vector<8x32xf32>
    %248 = arith.mulf %244, %208 : vector<8x32xf32>
    %249 = arith.mulf %243, %247 : vector<8x32xf32>
    %250 = arith.addf %248, %249 : vector<8x32xf32>
    %251 = math.tanh %250 : vector<8x32xf32>
    %252 = arith.mulf %245, %251 : vector<8x32xf32>
    %253 = arith.addf %149, %252 : vector<8x32xf32>
    %254 = arith.addf %191, %210 : vector<8x32xf32>
    %255 = arith.addf %233, %168 : vector<8x32xf32>
    %256 = tpu.concatenate %253, %254, %255 in 0 : vector<8x32xf32>, vector<8x32xf32>, vector<8x32xf32> -> vector<24x32xf32>
    %c0_66 = arith.constant 0 : index
    %c0_67 = arith.constant 0 : index
    %257 = vector.load %arg5[%c0_66, %c0_67] : memref<32x16xf32, #tpu.memory_space<vmem>>, vector<32x16xf32>
    %cst_68 = arith.constant dense<0.000000e+00> : vector<24x16xf32>
    %258 = tpu.matmul %256, %257, %cst_68 {dimension_numbers = #tpu.dot_dimension_numbers<[1], [0], [0], [1], [0, 0, 1, 1], [], []>} : vector<24x32xf32>, vector<32x16xf32>, vector<24x16xf32> -> vector<24x16xf32>
    %c0_69 = arith.constant 0 : index
    %c0_70 = arith.constant 0 : index
    %259 = vector.load %arg6[%c0_69, %c0_70] : memref<1x16xf32, #tpu.memory_space<vmem>>, vector<1x16xf32>
    %260 = vector.broadcast %259 : vector<1x16xf32> to vector<24x16xf32>
    %261 = arith.addf %258, %260 : vector<24x16xf32>
    %262 = math.tanh %261 : vector<24x16xf32>
    %263 = vector.extract_strided_slice %262 {offsets = [0, 0], sizes = [8, 16], strides = [1, 1]} : vector<24x16xf32> to vector<8x16xf32>
    %264 = vector.extract_strided_slice %262 {offsets = [8, 0], sizes = [8, 16], strides = [1, 1]} : vector<24x16xf32> to vector<8x16xf32>
    %265 = vector.extract_strided_slice %262 {offsets = [16, 0], sizes = [8, 16], strides = [1, 1]} : vector<24x16xf32> to vector<8x16xf32>
    %266 = arith.mulf %263, %264 : vector<8x16xf32>
    %267 = arith.mulf %263, %265 : vector<8x16xf32>
    %268 = arith.mulf %264, %265 : vector<8x16xf32>
    %269 = tpu.concatenate %266, %267, %268 in 0 : vector<8x16xf32>, vector<8x16xf32>, vector<8x16xf32> -> vector<24x16xf32>
    %c0_71 = arith.constant 0 : index
    %c0_72 = arith.constant 0 : index
    %270 = vector.load %arg7[%c0_71, %c0_72] : memref<16x8xf32, #tpu.memory_space<vmem>>, vector<16x8xf32>
    %cst_73 = arith.constant dense<0.000000e+00> : vector<24x8xf32>
    %271 = tpu.matmul %269, %270, %cst_73 {dimension_numbers = #tpu.dot_dimension_numbers<[1], [0], [0], [1], [0, 0, 1, 1], [], []>} : vector<24x16xf32>, vector<16x8xf32>, vector<24x8xf32> -> vector<24x8xf32>
    %c0_74 = arith.constant 0 : index
    %c0_75 = arith.constant 0 : index
    %272 = vector.load %arg8[%c0_74, %c0_75] : memref<1x8xf32, #tpu.memory_space<vmem>>, vector<1x8xf32>
    %273 = vector.broadcast %272 : vector<1x8xf32> to vector<24x8xf32>
    %274 = arith.addf %271, %273 : vector<24x8xf32>
    %275 = math.tanh %274 : vector<24x8xf32>
    %c0_76 = arith.constant 0 : index
    %c0_77 = arith.constant 0 : index
    %276 = vector.load %arg9[%c0_76, %c0_77] : memref<8x1xf32, #tpu.memory_space<vmem>>, vector<8x1xf32>
    %cst_78 = arith.constant dense<0.000000e+00> : vector<24x1xf32>
    %277 = tpu.matmul %275, %276, %cst_78 {dimension_numbers = #tpu.dot_dimension_numbers<[1], [0], [0], [1], [0, 0, 1, 1], [], []>} : vector<24x8xf32>, vector<8x1xf32>, vector<24x1xf32> -> vector<24x1xf32>
    %c0_79 = arith.constant 0 : index
    %c0_80 = arith.constant 0 : index
    %278 = vector.load %arg10[%c0_79, %c0_80] : memref<1x1xf32, #tpu.memory_space<vmem>>, vector<1x1xf32>
    %279 = vector.broadcast %278 : vector<1x1xf32> to vector<24x1xf32>
    %280 = arith.addf %277, %279 : vector<24x1xf32>
    %281 = arith.negf %280 : vector<24x1xf32>
    %282 = math.exp %281 : vector<24x1xf32>
    %cst_81 = arith.constant 1.000000e+00 : f32
    %283 = vector.broadcast %cst_81 : f32 to vector<24x1xf32>
    %284 = arith.addf %283, %282 : vector<24x1xf32>
    %285 = arith.divf %283, %284 : vector<24x1xf32>
    %286 = vector.extract_strided_slice %285 {offsets = [0, 0], sizes = [8, 1], strides = [1, 1]} : vector<24x1xf32> to vector<8x1xf32>
    %287 = vector.extract_strided_slice %285 {offsets = [8, 0], sizes = [8, 1], strides = [1, 1]} : vector<24x1xf32> to vector<8x1xf32>
    %288 = vector.extract_strided_slice %285 {offsets = [16, 0], sizes = [8, 1], strides = [1, 1]} : vector<24x1xf32> to vector<8x1xf32>
    %289 = arith.maximumf %286, %287 : vector<8x1xf32>
    %290 = arith.maximumf %288, %289 : vector<8x1xf32>
    %c0_82 = arith.constant 0 : index
    %c0_83 = arith.constant 0 : index
    %291 = vector.load %arg11[%c0_82, %c0_83] : memref<8x1xf32, #tpu.memory_space<vmem>>, vector<8x1xf32>
    tpu.vector_store %arg11[%c0_82, %c0_83], %290 {strides = array<i32>} : memref<8x1xf32, #tpu.memory_space<vmem>>, vector<8x1xf32>,
    return
  }
}

</mosaic_0001>

<llo_original>
// kernel: tpu_custom_call.1
$region0: #{tpu_custom_call.1}
  #allocation0 [shape = 'u32[]', space=smem, size = 0x4, offset = 0x4, fixed_abs, tag = 'smem constant byte address 0x4 - core index']
  #allocation1 [shape = 'u32[144,128]{1,0:T(1,128)}', space=vmem, size = 0x12000, scoped, tag = 'internal scratch']
  #allocation2 [shape = 'f32[8,8,256]{2,1,0:T(8,128)}', space=vmem, size = 0x10000, scoped, tag = 'scratch operand']
  #allocation3 [shape = 'f32[1,1]{1,0:T(1,128)S(1)}', space=vmem, size = 0x200, scoped, tag = 'scoped memory for tpu_custom_call.1']
  %s0 = inlined_call_operand.vmem [shape: f32[8,8,32], index: 0, kind: input, shape index: {}]
  %s1 = inlined_call_operand.hbm [shape: f32[32,256], index: 1, kind: input, shape index: {}]
  %s2 = inlined_call_operand.hbm [shape: f32[1,256], index: 2, kind: input, shape index: {}]
  %s3 = inlined_call_operand.vmem [shape: f32[32,128], index: 3, kind: input, shape index: {}]
  %s4 = inlined_call_operand.hbm [shape: f32[32,128], index: 4, kind: input, shape index: {}]
  %s5 = inlined_call_operand.vmem [shape: f32[32,16], index: 5, kind: input, shape index: {}]
  %s6 = inlined_call_operand.vmem [shape: f32[1,16], index: 6, kind: input, shape index: {}]
  %s7 = inlined_call_operand.vmem [shape: f32[16,8], index: 7, kind: input, shape index: {}]
  %s8 = inlined_call_operand.vmem [shape: f32[1,8], index: 8, kind: input, shape index: {}]
  %s9 = inlined_call_operand.vmem [shape: f32[8,1], index: 9, kind: input, shape index: {}]
  %s10 = inlined_call_operand.<no memory space> [shape: f32[1,1], index: 10, kind: input, shape index: {}]
  %s11 = inlined_call_operand.vmem [shape: f32[8,1], index: 11, kind: output, shape index: {}]
  %s12 = sld [smem:[#allocation0]]
  $region66: #{tpu_custom_call.1} parent=0
    _
  %s14 = ssub.s32 1, %s12
  %s15 = scalar_select 0, %s14, %s12
  %v16 = vstv %s10
  %17 = vst [vmem:[#allocation3] sm:$0x1] %v16
  $region1: #{tpu_custom_call.1} parent=0
    #allocation4 [shape = 'u8[32768]{0}', space=vmem, size = 0x8000, scoped, tag = 'input window, operand 1, single buffered']
    #allocation5 [shape = 's32[1]{0}', space=sflag, size = 0x4, scoped, tag = 'scoped memory for tpu_custom_call.1']
    #allocation6 [shape = 'u8[1024]{0}', space=vmem, size = 0x400, scoped, tag = 'input window, operand 2, single buffered']
    #allocation7 [shape = 's32[1]{0}', space=sflag, size = 0x4, scoped, tag = 'scoped memory for tpu_custom_call.1']
    #allocation8 [shape = 'u8[16384]{0}', space=vmem, size = 0x4000, scoped, tag = 'input window, operand 4, single buffered']
    %18 = vsyncpa [#allocation5], 0
    %19 = vsyncpa [#allocation7], 0
    // Predicated region
    $region2: #{tpu_custom_call.1} parent=1 // pred_check
      _
    $region3: #{tpu_custom_call.1} parent=1 // pred_check_branch
      %21 = sbr.rel (0) target = $region5
    $region4: #{tpu_custom_call.1} parent=1 // pred_region
      _
    $region5: #{tpu_custom_call.1} parent=1 // pred_fallthru
      _
    // Predicated region
    $region6: #{tpu_custom_call.1} parent=1 // pred_check
      _
    $region7: #{tpu_custom_call.1} parent=1 // pred_check_branch
      %23 = sbr.rel (0) target = $region9
    $region8: #{tpu_custom_call.1} parent=1 // pred_region
      %s25 = ssub.s32 1024, 1024
      %26 = vsyncadd [#allocation5], %s25
      %s27 = sshll.u32 [#allocation4], 4
      %s28 = int_to_ptr.vmem [resolvable:$true] %s27
      %33 = dma.hbm_to_vmem [thread:$0]  %s1, 1024, %s28, [#allocation5], 256, 256, 16
    $region9: #{tpu_custom_call.1} parent=1 // pred_fallthru
      _
    // Predicated region
    $region10: #{tpu_custom_call.1} parent=1 // pred_check
      _
    $region11: #{tpu_custom_call.1} parent=1 // pred_check_branch
      %35 = sbr.rel (0) target = $region13
    $region12: #{tpu_custom_call.1} parent=1 // pred_region
      %s37 = ssub.s32 32, 32
      %38 = vsyncadd [#allocation7], %s37
      %s40 = sshll.u32 [#allocation6], 4
      %s41 = int_to_ptr.vmem [resolvable:$true] %s40
      %43 = dma.hbm_to_vmem [thread:$0]  %s2, 32, %s41, [#allocation7]
    $region13: #{tpu_custom_call.1} parent=1 // pred_fallthru
      _
    // Predicated region
    $region14: #{tpu_custom_call.1} parent=1 // pred_check
      _
    $region15: #{tpu_custom_call.1} parent=1 // pred_check_branch
      %45 = sbr.rel (0) target = $region17
    $region16: #{tpu_custom_call.1} parent=1 // pred_region
      _
    $region17: #{tpu_custom_call.1} parent=1 // pred_fallthru
      _
    // Predicated region
    $region18: #{tpu_custom_call.1} parent=1 // pred_check
      _
    $region19: #{tpu_custom_call.1} parent=1 // pred_check_branch
      %47 = sbr.rel (0) target = $region21
    $region20: #{tpu_custom_call.1} parent=1 // pred_region
      %s49 = ssub.s32 512, 512
      %50 = vsyncadd [#allocation7], %s49
      %s51 = sshll.u32 [#allocation8], 4
      %s52 = int_to_ptr.vmem [resolvable:$true] %s51
      %57 = dma.hbm_to_vmem [thread:$0]  %s4, 512, %s52, [#allocation7], 128, 128, 8
    $region21: #{tpu_custom_call.1} parent=1 // pred_fallthru
      _
    // Predicated region
    $region22: #{tpu_custom_call.1} parent=1 // pred_check
      _
    $region23: #{tpu_custom_call.1} parent=1 // pred_check_branch
      %59 = sbr.rel (0) target = $region25
    $region24: #{tpu_custom_call.1} parent=1 // pred_region
      _
    $region25: #{tpu_custom_call.1} parent=1 // pred_fallthru
      _
    // Predicated region
    $region26: #{tpu_custom_call.1} parent=1 // pred_check
      _
    $region27: #{tpu_custom_call.1} parent=1 // pred_check_branch
      %61 = sbr.rel (0) target = $region29
    $region28: #{tpu_custom_call.1} parent=1 // pred_region
      _
    $region29: #{tpu_custom_call.1} parent=1 // pred_fallthru
      _
    // Predicated region
    $region30: #{tpu_custom_call.1} parent=1 // pred_check
      _
    $region31: #{tpu_custom_call.1} parent=1 // pred_check_branch
      %63 = sbr.rel (0) target = $region33
    $region32: #{tpu_custom_call.1} parent=1 // pred_region
      _
    $region33: #{tpu_custom_call.1} parent=1 // pred_fallthru
      _
    // Predicated region
    $region34: #{tpu_custom_call.1} parent=1 // pred_check
      _
    $region35: #{tpu_custom_call.1} parent=1 // pred_check_branch
      %65 = sbr.rel (0) target = $region37
    $region36: #{tpu_custom_call.1} parent=1 // pred_region
      _
    $region37: #{tpu_custom_call.1} parent=1 // pred_fallthru
      _
    // Predicated region
    $region38: #{tpu_custom_call.1} parent=1 // pred_check
      _
    $region39: #{tpu_custom_call.1} parent=1 // pred_check_branch
      %67 = sbr.rel (0) target = $region41
    $region40: #{tpu_custom_call.1} parent=1 // pred_region
      _
    $region41: #{tpu_custom_call.1} parent=1 // pred_fallthru
      _
    // Predicated region
    $region42: #{tpu_custom_call.1} parent=1 // pred_check
      _
    $region43: #{tpu_custom_call.1} parent=1 // pred_check_branch
      %69 = sbr.rel (0) target = $region45
    $region44: #{tpu_custom_call.1} parent=1 // pred_region
      _
    $region45: #{tpu_custom_call.1} parent=1 // pred_fallthru
      _
    // Predicated region
    $region46: #{tpu_custom_call.1} parent=1 // pred_check
      _
    $region47: #{tpu_custom_call.1} parent=1 // pred_check_branch
      %71 = sbr.rel (0) target = $region49
    $region48: #{tpu_custom_call.1} parent=1 // pred_region
      %72 = dma.done [#allocation5], 1024
    $region49: #{tpu_custom_call.1} parent=1 // pred_fallthru
      _
    // Predicated region
    $region50: #{tpu_custom_call.1} parent=1 // pred_check
      _
    $region51: #{tpu_custom_call.1} parent=1 // pred_check_branch
      %74 = sbr.rel (0) target = $region53
    $region52: #{tpu_custom_call.1} parent=1 // pred_region
      %75 = dma.done [#allocation7], 32
    $region53: #{tpu_custom_call.1} parent=1 // pred_fallthru
      _
    // Predicated region
    $region54: #{tpu_custom_call.1} parent=1 // pred_check
      _
    $region55: #{tpu_custom_call.1} parent=1 // pred_check_branch
      %77 = sbr.rel (0) target = $region57
    $region56: #{tpu_custom_call.1} parent=1 // pred_region
      %78 = dma.done [#allocation7], 512
    $region57: #{tpu_custom_call.1} parent=1 // pred_fallthru
      _
    %v79 = vld [vmem:[%s0] sm:$0xff]
    %v80 = vld [vmem:[%s0 + $0x8] sm:$0xff]
    %v81 = vld [vmem:[%s0 + $0x10] sm:$0xff]
    %v82 = vld [vmem:[%s0 + $0x18] sm:$0xff]
    %v83 = vld [vmem:[%s0 + $0x20] sm:$0xff]
    %v84 = vld [vmem:[%s0 + $0x28] sm:$0xff]
    %v85 = vld [vmem:[%s0 + $0x30] sm:$0xff]
    %v86 = vld [vmem:[%s0 + $0x38] sm:$0xff]
    %v87 = vld [vmem:[#allocation4] sm:$0xff]
    %v88 = vld [vmem:[#allocation4 + $0x8] sm:$0xff]
    %v89 = vld [vmem:[#allocation4 + $0x10] sm:$0xff]
    %v90 = vld [vmem:[#allocation4 + $0x18] sm:$0xff]
    %v91 = vld [vmem:[#allocation4 + $0x20] sm:$0xff]
    %v92 = vld [vmem:[#allocation4 + $0x28] sm:$0xff]
    %v93 = vld [vmem:[#allocation4 + $0x30] sm:$0xff]
    %v94 = vld [vmem:[#allocation4 + $0x38] sm:$0xff]
    %v95 = vld [vmem:[#allocation6] sm:$0x3]
    %v97 = vlaneseq
    %v98 = vshrl.u32 %v97, 7
    %v99 = vsub.s32 0, %v98
    %v100 = vrot.slane %v95, %v99
    %v101 = vlaneseq
    %v102 = vshrl.u32 %v101, 7
    %v103 = vsub.s32 1, %v102
    %v104 = vrot.slane %v95, %v103
    %vm107 = vcmask 261120
    %v109 = vsel %vm107, %v79, 0
    %v112 = vsel %vm107, %v80, 0
    %v115 = vsel %vm107, %v81, 0
    %v118 = vsel %vm107, %v82, 0
    %v121 = vsel %vm107, %v83, 0
    %v124 = vsel %vm107, %v84, 0
    %v127 = vsel %vm107, %v85, 0
    %v130 = vsel %vm107, %v86, 0
    %132 = vmatprep.subr.mxu0 %v88
    %133 = vmatpush1.msra.mxu0 %v87
    %134 = vmatprep.subr.mxu0 %v90
    %135 = vmatpush1.msra.mxu0 %v89
    %136 = vmatprep.subr.mxu0 %v92
    %137 = vmatpush1.msra.mxu0 %v91
    %138 = vmatprep.subr.mxu0 %v94
    %139 = vmatpush1.msra.mxu0 %v93
    %140 = vmatprep.subr.mxu0 0.0
    %141 = vmatpush1.msra.mxu0 0.0
    %142 = vmatprep.subr.mxu0 0.0
    %143 = vmatpush1.msra.mxu0 0.0
    %144 = vmatprep.subr.mxu0 0.0
    %145 = vmatpush1.msra.mxu0 0.0
    %146 = vmatprep.subr.mxu0 0.0
    %147 = vmatpush1.msra.mxu0 0.0
    %148 = vmatprep.subr.mxu0 0.0
    %149 = vmatpush1.msra.mxu0 0.0
    %150 = vmatprep.subr.mxu0 0.0
    %151 = vmatpush1.msra.mxu0 0.0
    %152 = vmatprep.subr.mxu0 0.0
    %153 = vmatpush1.msra.mxu0 0.0
    %154 = vmatprep.subr.mxu0 0.0
    %155 = vmatpush1.msra.mxu0 0.0
    %156 = vmatprep.subr.mxu0 0.0
    %157 = vmatpush1.msra.mxu0 0.0
    %158 = vmatprep.subr.mxu0 0.0
    %159 = vmatpush1.msra.mxu0 0.0
    %160 = vmatprep.subr.mxu0 0.0
    %161 = vmatpush1.msra.mxu0 0.0
    %162 = vmatprep.subr.mxu0 0.0
    %163 = vmatpush1.msra.mxu0 0.0
    %164 = vmatprep.subr.mxu0 0.0
    %165 = vmatpush1.msra.mxu0 0.0
    %166 = vmatprep.subr.mxu0 0.0
    %167 = vmatpush1.msra.mxu0 0.0
    %168 = vmatprep.subr.mxu0 0.0
    %169 = vmatpush1.msra.mxu0 0.0
    %170 = vmatprep.subr.mxu0 0.0
    %171 = vmatpush1.msra.mxu0 0.0
    %172 = vmatprep.subr.mxu0 0.0
    %173 = vmatpush1.msra.mxu0 0.0
    %174 = vmatprep.subr.mxu0 0.0
    %175 = vmatpush1.msra.mxu0 0.0
    %176 = vmatprep.subr.mxu0 0.0
    %177 = vmatpush1.msra.mxu0 0.0
    %178 = vmatprep.subr.mxu0 0.0
    %179 = vmatpush1.msra.mxu0 0.0
    %180 = vmatprep.subr.mxu0 0.0
    %181 = vmatpush1.msra.mxu0 0.0
    %182 = vmatprep.subr.mxu0 0.0
    %183 = vmatpush1.msra.mxu0 0.0
    %184 = vmatprep.subr.mxu0 0.0
    %185 = vmatpush1.msra.mxu0 0.0
    %186 = vmatprep.subr.mxu0 0.0
    %187 = vmatpush1.msra.mxu0 0.0
    %188 = vmatprep.subr.mxu0 0.0
    %189 = vmatpush1.msra.mxu0 0.0
    %190 = vmatprep.subr.mxu0 0.0
    %191 = vmatpush1.msra.mxu0 0.0
    %192 = vmatprep.subr.mxu0 0.0
    %193 = vmatpush1.msra.mxu0 0.0
    %194 = vmatprep.subr.mxu0 0.0
    %195 = vmatpush1.msra.mxu0 0.0
    %196 = vmatprep.mubr.f32.mxu0 0.0
    %197 = vmatmul.mubr.f32.gmra.mrb[0].mxu0 %v109
    %v198 = vpop.f32.mrb[0].mxu0
    %v199 = vadd.f32 %v100, %v198
    %v200 = vpop.f32.mrb[0].mxu0
    %v201 = vadd.f32 %v104, %v200
    %202 = vmatprep.mubr.f32.mxu0 0.0
    %203 = vmatmul.mubr.f32.gmra.mrb[0].mxu0 %v112
    %v204 = vpop.f32.mrb[0].mxu0
    %v205 = vadd.f32 %v100, %v204
    %v206 = vpop.f32.mrb[0].mxu0
    %v207 = vadd.f32 %v104, %v206
    %208 = vmatprep.mubr.f32.mxu0 0.0
    %209 = vmatmul.mubr.f32.gmra.mrb[0].mxu0 %v115
    %v210 = vpop.f32.mrb[0].mxu0
    %v211 = vadd.f32 %v100, %v210
    %v212 = vpop.f32.mrb[0].mxu0
    %v213 = vadd.f32 %v104, %v212
    %214 = vmatprep.mubr.f32.mxu0 0.0
    %215 = vmatmul.mubr.f32.gmra.mrb[0].mxu0 %v118
    %v216 = vpop.f32.mrb[0].mxu0
    %v217 = vadd.f32 %v100, %v216
    %v218 = vpop.f32.mrb[0].mxu0
    %v219 = vadd.f32 %v104, %v218
    %220 = vmatprep.mubr.f32.mxu0 0.0
    %221 = vmatmul.mubr.f32.gmra.mrb[0].mxu0 %v121
    %v222 = vpop.f32.mrb[0].mxu0
    %v223 = vadd.f32 %v100, %v222
    %v224 = vpop.f32.mrb[0].mxu0
    %v225 = vadd.f32 %v104, %v224
    %226 = vmatprep.mubr.f32.mxu0 0.0
    %227 = vmatmul.mubr.f32.gmra.mrb[0].mxu0 %v124
    %v228 = vpop.f32.mrb[0].mxu0
    %v229 = vadd.f32 %v100, %v228
    %v230 = vpop.f32.mrb[0].mxu0
    %v231 = vadd.f32 %v104, %v230
    %232 = vmatprep.mubr.f32.mxu0 0.0
    %233 = vmatmul.mubr.f32.gmra.mrb[0].mxu0 %v127
    %v234 = vpop.f32.mrb[0].mxu0
    %v235 = vadd.f32 %v100, %v234
    %v236 = vpop.f32.mrb[0].mxu0
    %v237 = vadd.f32 %v104, %v236
    %238 = vmatprep.mubr.f32.mxu0 0.0
    %239 = vmatmul.mubr.f32.gmra.mrb[0].mxu0 %v130
    %v240 = vpop.f32.mrb[0].mxu0
    %v241 = vadd.f32 %v100, %v240
    %v242 = vpop.f32.mrb[0].mxu0
    %v243 = vadd.f32 %v104, %v242
    %244 = vdwg.mxu0
    %245 = vst [vmem:[#allocation2] sm:$0xff] %v199
    %246 = vst [vmem:[#allocation2 + $0x8] sm:$0xff] %v201
    %247 = vst [vmem:[#allocation2 + $0x10] sm:$0xff] %v205
    %248 = vst [vmem:[#allocation2 + $0x18] sm:$0xff] %v207
    %249 = vst [vmem:[#allocation2 + $0x20] sm:$0xff] %v211
    %250 = vst [vmem:[#allocation2 + $0x28] sm:$0xff] %v213
    %251 = vst [vmem:[#allocation2 + $0x30] sm:$0xff] %v217
    %252 = vst [vmem:[#allocation2 + $0x38] sm:$0xff] %v219
    %253 = vst [vmem:[#allocation2 + $0x40] sm:$0xff] %v223
    %254 = vst [vmem:[#allocation2 + $0x48] sm:$0xff] %v225
    %255 = vst [vmem:[#allocation2 + $0x50] sm:$0xff] %v229
    %256 = vst [vmem:[#allocation2 + $0x58] sm:$0xff] %v231
    %257 = vst [vmem:[#allocation2 + $0x60] sm:$0xff] %v235
    %258 = vst [vmem:[#allocation2 + $0x68] sm:$0xff] %v237
    %259 = vst [vmem:[#allocation2 + $0x70] sm:$0xff] %v241
    %260 = vst [vmem:[#allocation2 + $0x78] sm:$0xff] %v243
    %v261 = vld [vmem:[%s3] sm:$0xff]
    %v262 = vld [vmem:[%s3 + $0x8] sm:$0xff]
    %v263 = vld [vmem:[%s3 + $0x10] sm:$0xff]
    %v264 = vld [vmem:[%s3 + $0x18] sm:$0xff]
    %v265 = vld [vmem:[#allocation8] sm:$0xff]
    %v266 = vld [vmem:[#allocation8 + $0x8] sm:$0xff]
    %v267 = vld [vmem:[#allocation8 + $0x10] sm:$0xff]
    %v268 = vld [vmem:[#allocation8 + $0x18] sm:$0xff]
    %s269 = scalar_lea.vmem [#allocation2], 112
    %v270 = vld [vmem:[%s269 + $0x8] sm:$0xff]
    %v272 = vsel %vm107, 0.0, 0
    %274 = vmatprep.subr.mxu0 0.0
    %275 = vmatpush1.msra.mxu0 %v265
    %276 = vmatprep.subr.mxu0 0.0
    %277 = vmatpush1.msra.mxu0 %v266
    %278 = vmatprep.subr.mxu0 0.0
    %279 = vmatpush1.msra.mxu0 %v267
    %280 = vmatprep.subr.mxu0 0.0
    %281 = vmatpush1.msra.mxu0 %v268
    %282 = vmatprep.subr.mxu0 0.0
    %283 = vmatpush1.msra.mxu0 0.0
    %284 = vmatprep.subr.mxu0 0.0
    %285 = vmatpush1.msra.mxu0 0.0
    %286 = vmatprep.subr.mxu0 0.0
    %287 = vmatpush1.msra.mxu0 0.0
    %288 = vmatprep.subr.mxu0 0.0
    %289 = vmatpush1.msra.mxu0 0.0
    %290 = vmatprep.subr.mxu0 0.0
    %291 = vmatpush1.msra.mxu0 0.0
    %292 = vmatprep.subr.mxu0 0.0
    %293 = vmatpush1.msra.mxu0 0.0
    %294 = vmatprep.subr.mxu0 0.0
    %295 = vmatpush1.msra.mxu0 0.0
    %296 = vmatprep.subr.mxu0 0.0
    %297 = vmatpush1.msra.mxu0 0.0
    %298 = vmatprep.subr.mxu0 0.0
    %299 = vmatpush1.msra.mxu0 0.0
    %300 = vmatprep.subr.mxu0 0.0
    %301 = vmatpush1.msra.mxu0 0.0
    %302 = vmatprep.subr.mxu0 0.0
    %303 = vmatpush1.msra.mxu0 0.0
    %304 = vmatprep.subr.mxu0 0.0
    %305 = vmatpush1.msra.mxu0 0.0
    %306 = vmatprep.subr.mxu0 0.0
    %307 = vmatpush1.msra.mxu0 0.0
    %308 = vmatprep.subr.mxu0 0.0
    %309 = vmatpush1.msra.mxu0 0.0
    %310 = vmatprep.subr.mxu0 0.0
    %311 = vmatpush1.msra.mxu0 0.0
    %312 = vmatprep.subr.mxu0 0.0
    %313 = vmatpush1.msra.mxu0 0.0
    %314 = vmatprep.subr.mxu0 0.0
    %315 = vmatpush1.msra.mxu0 0.0
    %316 = vmatprep.subr.mxu0 0.0
    %317 = vmatpush1.msra.mxu0 0.0
    %318 = vmatprep.subr.mxu0 0.0
    %319 = vmatpush1.msra.mxu0 0.0
    %320 = vmatprep.subr.mxu0 0.0
    %321 = vmatpush1.msra.mxu0 0.0
    %322 = vmatprep.subr.mxu0 0.0
    %323 = vmatpush1.msra.mxu0 0.0
    %324 = vmatprep.subr.mxu0 0.0
    %325 = vmatpush1.msra.mxu0 0.0
    %326 = vmatprep.subr.mxu0 0.0
    %327 = vmatpush1.msra.mxu0 0.0
    %328 = vmatprep.subr.mxu0 0.0
    %329 = vmatpush1.msra.mxu0 0.0
    %330 = vmatprep.subr.mxu0 0.0
    %331 = vmatpush1.msra.mxu0 0.0
    %332 = vmatprep.subr.mxu0 0.0
    %333 = vmatpush1.msra.mxu0 0.0
    %334 = vmatprep.subr.mxu0 0.0
    %335 = vmatpush1.msra.mxu0 0.0
    %336 = vmatprep.subr.mxu0 0.0
    %337 = vmatpush1.msra.mxu0 0.0
    %338 = vmatprep.mubr.f32.mxu0 0.0
    %339 = vmatmul.mubr.f32.gmra.mrb[0].mxu0 %v272
    %v340 = vpop.f32.mrb[0].mxu0
    %v341 = vadd.f32 0.0, %v340
    %v342 = vpop.f32.mrb[0].mxu0
    %343 = vdwg.mxu0
    %v344 = vadd.f32 %v270, %v341
    %v345 = vxor.u32 %v344, 2147483648
    %v346 = vmul.f32 %v345, 1.442695
    %v347 = vpow.pop %v346
    %v348 = vadd.f32 %v347, 1.0
    %v349 = vrcp.pop %v348
    %v350 = vmul.f32 1.0, %v349
    %v351 = vtanh.pop %v344
    %v352 = vmul.f32 %v350, 0.0
    %354 = vrot.lane.b32.xlu0 %v351, 32
    %v355 = vpop.permute.xlu0 %354
    %v357 = vmul.f32 %v350, %v355
    %359 = vrot.lane.b32.xlu0 %v357, 32
    %v360 = vpop.permute.xlu0 %359
    %v362 = vadd.f32 %v352, %v360
    %v363 = vtanh.pop %v362
    %365 = vrot.lane.b32.xlu0 %v363, 32
    %v366 = vpop.permute.xlu0 %365
    %v368 = vmul.f32 %v350, %v366
    %s369 = scalar_lea.vmem [#allocation2], 96
    %v370 = vld [vmem:[%s369 + $0x8] sm:$0xff]
    %372 = vrot.lane.b32.xlu0 %v368, 64
    %v373 = vpop.permute.xlu0 %372
    %v374 = vsel %vm107, %v373, 0
    %376 = vmatprep.subr.mxu0 0.0
    %377 = vmatpush1.msra.mxu0 %v265
    %378 = vmatprep.subr.mxu0 0.0
    %379 = vmatpush1.msra.mxu0 %v266
    %380 = vmatprep.subr.mxu0 0.0
    %381 = vmatpush1.msra.mxu0 %v267
    %382 = vmatprep.subr.mxu0 0.0
    %383 = vmatpush1.msra.mxu0 %v268
    %384 = vmatprep.subr.mxu0 0.0
    %385 = vmatpush1.msra.mxu0 0.0
    %386 = vmatprep.subr.mxu0 0.0
    %387 = vmatpush1.msra.mxu0 0.0
    %388 = vmatprep.subr.mxu0 0.0
    %389 = vmatpush1.msra.mxu0 0.0
    %390 = vmatprep.subr.mxu0 0.0
    %391 = vmatpush1.msra.mxu0 0.0
    %392 = vmatprep.subr.mxu0 0.0
    %393 = vmatpush1.msra.mxu0 0.0
    %394 = vmatprep.subr.mxu0 0.0
    %395 = vmatpush1.msra.mxu0 0.0
    %396 = vmatprep.subr.mxu0 0.0
    %397 = vmatpush1.msra.mxu0 0.0
    %398 = vmatprep.subr.mxu0 0.0
    %399 = vmatpush1.msra.mxu0 0.0
    %400 = vmatprep.subr.mxu0 0.0
    %401 = vmatpush1.msra.mxu0 0.0
    %402 = vmatprep.subr.mxu0 0.0
    %403 = vmatpush1.msra.mxu0 0.0
    %404 = vmatprep.subr.mxu0 0.0
    %405 = vmatpush1.msra.mxu0 0.0
    %406 = vmatprep.subr.mxu0 0.0
    %407 = vmatpush1.msra.mxu0 0.0
    %408 = vmatprep.subr.mxu0 0.0
    %409 = vmatpush1.msra.mxu0 0.0
    %410 = vmatprep.subr.mxu0 0.0
    %411 = vmatpush1.msra.mxu0 0.0
    %412 = vmatprep.subr.mxu0 0.0
    %413 = vmatpush1.msra.mxu0 0.0
    %414 = vmatprep.subr.mxu0 0.0
    %415 = vmatpush1.msra.mxu0 0.0
    %416 = vmatprep.subr.mxu0 0.0
    %417 = vmatpush1.msra.mxu0 0.0
    %418 = vmatprep.subr.mxu0 0.0
    %419 = vmatpush1.msra.mxu0 0.0
    %420 = vmatprep.subr.mxu0 0.0
    %421 = vmatpush1.msra.mxu0 0.0
    %422 = vmatprep.subr.mxu0 0.0
    %423 = vmatpush1.msra.mxu0 0.0
    %424 = vmatprep.subr.mxu0 0.0
    %425 = vmatpush1.msra.mxu0 0.0
    %426 = vmatprep.subr.mxu0 0.0
    %427 = vmatpush1.msra.mxu0 0.0
    %428 = vmatprep.subr.mxu0 0.0
    %429 = vmatpush1.msra.mxu0 0.0
    %430 = vmatprep.subr.mxu0 0.0
    %431 = vmatpush1.msra.mxu0 0.0
    %432 = vmatprep.subr.mxu0 0.0
    %433 = vmatpush1.msra.mxu0 0.0
    %434 = vmatprep.subr.mxu0 0.0
    %435 = vmatpush1.msra.mxu0 0.0
    %436 = vmatprep.subr.mxu0 0.0
    %437 = vmatpush1.msra.mxu0 0.0
    %438 = vmatprep.subr.mxu0 0.0
    %439 = vmatpush1.msra.mxu0 0.0
    %440 = vmatprep.mubr.f32.mxu0 0.0
    %441 = vmatmul.mubr.f32.gmra.mrb[0].mxu0 %v374
    %v442 = vpop.f32.mrb[0].mxu0
    %v443 = vadd.f32 0.0, %v442
    %v444 = vpop.f32.mrb[0].mxu0
    %445 = vdwg.mxu0
    %v446 = vadd.f32 %v370, %v443
    %v447 = vxor.u32 %v446, 2147483648
    %v448 = vmul.f32 %v447, 1.442695
    %v449 = vpow.pop %v448
    %v450 = vadd.f32 %v449, 1.0
    %v451 = vrcp.pop %v450
    %v452 = vmul.f32 1.0, %v451
    %v453 = vtanh.pop %v446
    %v454 = vmul.f32 %v452, %v362
    %456 = vrot.lane.b32.xlu0 %v453, 32
    %v457 = vpop.permute.xlu0 %456
    %v459 = vmul.f32 %v452, %v457
    %461 = vrot.lane.b32.xlu0 %v459, 32
    %v462 = vpop.permute.xlu0 %461
    %v464 = vadd.f32 %v454, %v462
    %v465 = vtanh.pop %v464
    %467 = vrot.lane.b32.xlu0 %v465, 32
    %v468 = vpop.permute.xlu0 %467
    %v470 = vmul.f32 %v452, %v468
    %s471 = scalar_lea.vmem [#allocation2], 80
    %v472 = vld [vmem:[%s471 + $0x8] sm:$0xff]
    %474 = vrot.lane.b32.xlu0 %v470, 64
    %v475 = vpop.permute.xlu0 %474
    %v476 = vsel %vm107, %v475, 0
    %478 = vmatprep.subr.mxu0 0.0
    %479 = vmatpush1.msra.mxu0 %v265
    %480 = vmatprep.subr.mxu0 0.0
    %481 = vmatpush1.msra.mxu0 %v266
    %482 = vmatprep.subr.mxu0 0.0
    %483 = vmatpush1.msra.mxu0 %v267
    %484 = vmatprep.subr.mxu0 0.0
    %485 = vmatpush1.msra.mxu0 %v268
    %486 = vmatprep.subr.mxu0 0.0
    %487 = vmatpush1.msra.mxu0 0.0
    %488 = vmatprep.subr.mxu0 0.0
    %489 = vmatpush1.msra.mxu0 0.0
    %490 = vmatprep.subr.mxu0 0.0
    %491 = vmatpush1.msra.mxu0 0.0
    %492 = vmatprep.subr.mxu0 0.0
    %493 = vmatpush1.msra.mxu0 0.0
    %494 = vmatprep.subr.mxu0 0.0
    %495 = vmatpush1.msra.mxu0 0.0
    %496 = vmatprep.subr.mxu0 0.0
    %497 = vmatpush1.msra.mxu0 0.0
    %498 = vmatprep.subr.mxu0 0.0
    %499 = vmatpush1.msra.mxu0 0.0
    %500 = vmatprep.subr.mxu0 0.0
    %501 = vmatpush1.msra.mxu0 0.0
    %502 = vmatprep.subr.mxu0 0.0
    %503 = vmatpush1.msra.mxu0 0.0
    %504 = vmatprep.subr.mxu0 0.0
    %505 = vmatpush1.msra.mxu0 0.0
    %506 = vmatprep.subr.mxu0 0.0
    %507 = vmatpush1.msra.mxu0 0.0
    %508 = vmatprep.subr.mxu0 0.0
    %509 = vmatpush1.msra.mxu0 0.0
    %510 = vmatprep.subr.mxu0 0.0
    %511 = vmatpush1.msra.mxu0 0.0
    %512 = vmatprep.subr.mxu0 0.0
    %513 = vmatpush1.msra.mxu0 0.0
    %514 = vmatprep.subr.mxu0 0.0
    %515 = vmatpush1.msra.mxu0 0.0
    %516 = vmatprep.subr.mxu0 0.0
    %517 = vmatpush1.msra.mxu0 0.0
    %518 = vmatprep.subr.mxu0 0.0
    %519 = vmatpush1.msra.mxu0 0.0
    %520 = vmatprep.subr.mxu0 0.0
    %521 = vmatpush1.msra.mxu0 0.0
    %522 = vmatprep.subr.mxu0 0.0
    %523 = vmatpush1.msra.mxu0 0.0
    %524 = vmatprep.subr.mxu0 0.0
    %525 = vmatpush1.msra.mxu0 0.0
    %526 = vmatprep.subr.mxu0 0.0
    %527 = vmatpush1.msra.mxu0 0.0
    %528 = vmatprep.subr.mxu0 0.0
    %529 = vmatpush1.msra.mxu0 0.0
    %530 = vmatprep.subr.mxu0 0.0
    %531 = vmatpush1.msra.mxu0 0.0
    %532 = vmatprep.subr.mxu0 0.0
    %533 = vmatpush1.msra.mxu0 0.0
    %534 = vmatprep.subr.mxu0 0.0
    %535 = vmatpush1.msra.mxu0 0.0
    %536 = vmatprep.subr.mxu0 0.0
    %537 = vmatpush1.msra.mxu0 0.0
    %538 = vmatprep.subr.mxu0 0.0
    %539 = vmatpush1.msra.mxu0 0.0
    %540 = vmatprep.subr.mxu0 0.0
    %541 = vmatpush1.msra.mxu0 0.0
    %542 = vmatprep.mubr.f32.mxu0 0.0
    %543 = vmatmul.mubr.f32.gmra.mrb[0].mxu0 %v476
    %v544 = vpop.f32.mrb[0].mxu0
    %v545 = vadd.f32 0.0, %v544
    %v546 = vpop.f32.mrb[0].mxu0
    %547 = vdwg.mxu0
    %v548 = vadd.f32 %v472, %v545
    %v549 = vxor.u32 %v548, 2147483648
    %v550 = vmul.f32 %v549, 1.442695
    %v551 = vpow.pop %v550
    %v552 = vadd.f32 %v551, 1.0
    %v553 = vrcp.pop %v552
    %v554 = vmul.f32 1.0, %v553
    %v555 = vtanh.pop %v548
    %v556 = vmul.f32 %v554, %v464
    %558 = vrot.lane.b32.xlu0 %v555, 32
    %v559 = vpop.permute.xlu0 %558
    %v561 = vmul.f32 %v554, %v559
    %563 = vrot.lane.b32.xlu0 %v561, 32
    %v564 = vpop.permute.xlu0 %563
    %v566 = vadd.f32 %v556, %v564
    %v567 = vtanh.pop %v566
    %569 = vrot.lane.b32.xlu0 %v567, 32
    %v570 = vpop.permute.xlu0 %569
    %v572 = vmul.f32 %v554, %v570
    %s573 = scalar_lea.vmem [#allocation2], 64
    %v574 = vld [vmem:[%s573 + $0x8] sm:$0xff]
    %576 = vrot.lane.b32.xlu0 %v572, 64
    %v577 = vpop.permute.xlu0 %576
    %v578 = vsel %vm107, %v577, 0
    %580 = vmatprep.subr.mxu0 0.0
    %581 = vmatpush1.msra.mxu0 %v265
    %582 = vmatprep.subr.mxu0 0.0
    %583 = vmatpush1.msra.mxu0 %v266
    %584 = vmatprep.subr.mxu0 0.0
    %585 = vmatpush1.msra.mxu0 %v267
    %586 = vmatprep.subr.mxu0 0.0
    %587 = vmatpush1.msra.mxu0 %v268
    %588 = vmatprep.subr.mxu0 0.0
    %589 = vmatpush1.msra.mxu0 0.0
    %590 = vmatprep.subr.mxu0 0.0
    %591 = vmatpush1.msra.mxu0 0.0
    %592 = vmatprep.subr.mxu0 0.0
    %593 = vmatpush1.msra.mxu0 0.0
    %594 = vmatprep.subr.mxu0 0.0
    %595 = vmatpush1.msra.mxu0 0.0
    %596 = vmatprep.subr.mxu0 0.0
    %597 = vmatpush1.msra.mxu0 0.0
    %598 = vmatprep.subr.mxu0 0.0
    %599 = vmatpush1.msra.mxu0 0.0
    %600 = vmatprep.subr.mxu0 0.0
    %601 = vmatpush1.msra.mxu0 0.0
    %602 = vmatprep.subr.mxu0 0.0
    %603 = vmatpush1.msra.mxu0 0.0
    %604 = vmatprep.subr.mxu0 0.0
    %605 = vmatpush1.msra.mxu0 0.0
    %606 = vmatprep.subr.mxu0 0.0
    %607 = vmatpush1.msra.mxu0 0.0
    %608 = vmatprep.subr.mxu0 0.0
    %609 = vmatpush1.msra.mxu0 0.0
    %610 = vmatprep.subr.mxu0 0.0
    %611 = vmatpush1.msra.mxu0 0.0
    %612 = vmatprep.subr.mxu0 0.0
    %613 = vmatpush1.msra.mxu0 0.0
    %614 = vmatprep.subr.mxu0 0.0
    %615 = vmatpush1.msra.mxu0 0.0
    %616 = vmatprep.subr.mxu0 0.0
    %617 = vmatpush1.msra.mxu0 0.0
    %618 = vmatprep.subr.mxu0 0.0
    %619 = vmatpush1.msra.mxu0 0.0
    %620 = vmatprep.subr.mxu0 0.0
    %621 = vmatpush1.msra.mxu0 0.0
    %622 = vmatprep.subr.mxu0 0.0
    %623 = vmatpush1.msra.mxu0 0.0
    %624 = vmatprep.subr.mxu0 0.0
    %625 = vmatpush1.msra.mxu0 0.0
    %626 = vmatprep.subr.mxu0 0.0
    %627 = vmatpush1.msra.mxu0 0.0
    %628 = vmatprep.subr.mxu0 0.0
    %629 = vmatpush1.msra.mxu0 0.0
    %630 = vmatprep.subr.mxu0 0.0
    %631 = vmatpush1.msra.mxu0 0.0
    %632 = vmatprep.subr.mxu0 0.0
    %633 = vmatpush1.msra.mxu0 0.0
    %634 = vmatprep.subr.mxu0 0.0
    %635 = vmatpush1.msra.mxu0 0.0
    %636 = vmatprep.subr.mxu0 0.0
    %637 = vmatpush1.msra.mxu0 0.0
    %638 = vmatprep.subr.mxu0 0.0
    %639 = vmatpush1.msra.mxu0 0.0
    %640 = vmatprep.subr.mxu0 0.0
    %641 = vmatpush1.msra.mxu0 0.0
    %642 = vmatprep.subr.mxu0 0.0
    %643 = vmatpush1.msra.mxu0 0.0
    %644 = vmatprep.mubr.f32.mxu0 0.0
    %645 = vmatmul.mubr.f32.gmra.mrb[0].mxu0 %v578
    %v646 = vpop.f32.mrb[0].mxu0
    %v647 = vadd.f32 0.0, %v646
    %v648 = vpop.f32.mrb[0].mxu0
    %649 = vdwg.mxu0
    %v650 = vadd.f32 %v574, %v647
    %v651 = vxor.u32 %v650, 2147483648
    %v652 = vmul.f32 %v651, 1.442695
    %v653 = vpow.pop %v652
    %v654 = vadd.f32 %v653, 1.0
    %v655 = vrcp.pop %v654
    %v656 = vmul.f32 1.0, %v655
    %v657 = vtanh.pop %v650
    %v658 = vmul.f32 %v656, %v566
    %660 = vrot.lane.b32.xlu0 %v657, 32
    %v661 = vpop.permute.xlu0 %660
    %v663 = vmul.f32 %v656, %v661
    %665 = vrot.lane.b32.xlu0 %v663, 32
    %v666 = vpop.permute.xlu0 %665
    %v668 = vadd.f32 %v658, %v666
    %v669 = vtanh.pop %v668
    %671 = vrot.lane.b32.xlu0 %v669, 32
    %v672 = vpop.permute.xlu0 %671
    %v674 = vmul.f32 %v656, %v672
    %s675 = scalar_lea.vmem [#allocation2], 48
    %v676 = vld [vmem:[%s675 + $0x8] sm:$0xff]
    %678 = vrot.lane.b32.xlu0 %v674, 64
    %v679 = vpop.permute.xlu0 %678
    %v680 = vsel %vm107, %v679, 0
    %682 = vmatprep.subr.mxu0 0.0
    %683 = vmatpush1.msra.mxu0 %v265
    %684 = vmatprep.subr.mxu0 0.0
    %685 = vmatpush1.msra.mxu0 %v266
    %686 = vmatprep.subr.mxu0 0.0
    %687 = vmatpush1.msra.mxu0 %v267
    %688 = vmatprep.subr.mxu0 0.0
    %689 = vmatpush1.msra.mxu0 %v268
    %690 = vmatprep.subr.mxu0 0.0
    %691 = vmatpush1.msra.mxu0 0.0
    %692 = vmatprep.subr.mxu0 0.0
    %693 = vmatpush1.msra.mxu0 0.0
    %694 = vmatprep.subr.mxu0 0.0
    %695 = vmatpush1.msra.mxu0 0.0
    %696 = vmatprep.subr.mxu0 0.0
    %697 = vmatpush1.msra.mxu0 0.0
    %698 = vmatprep.subr.mxu0 0.0
    %699 = vmatpush1.msra.mxu0 0.0
    %700 = vmatprep.subr.mxu0 0.0
    %701 = vmatpush1.msra.mxu0 0.0
    %702 = vmatprep.subr.mxu0 0.0
    %703 = vmatpush1.msra.mxu0 0.0
    %704 = vmatprep.subr.mxu0 0.0
    %705 = vmatpush1.msra.mxu0 0.0
    %706 = vmatprep.subr.mxu0 0.0
    %707 = vmatpush1.msra.mxu0 0.0
    %708 = vmatprep.subr.mxu0 0.0
    %709 = vmatpush1.msra.mxu0 0.0
    %710 = vmatprep.subr.mxu0 0.0
    %711 = vmatpush1.msra.mxu0 0.0
    %712 = vmatprep.subr.mxu0 0.0
    %713 = vmatpush1.msra.mxu0 0.0
    %714 = vmatprep.subr.mxu0 0.0
    %715 = vmatpush1.msra.mxu0 0.0
    %716 = vmatprep.subr.mxu0 0.0
    %717 = vmatpush1.msra.mxu0 0.0
    %718 = vmatprep.subr.mxu0 0.0
    %719 = vmatpush1.msra.mxu0 0.0
    %720 = vmatprep.subr.mxu0 0.0
    %721 = vmatpush1.msra.mxu0 0.0
    %722 = vmatprep.subr.mxu0 0.0
    %723 = vmatpush1.msra.mxu0 0.0
    %724 = vmatprep.subr.mxu0 0.0
    %725 = vmatpush1.msra.mxu0 0.0
    %726 = vmatprep.subr.mxu0 0.0
    %727 = vmatpush1.msra.mxu0 0.0
    %728 = vmatprep.subr.mxu0 0.0
    %729 = vmatpush1.msra.mxu0 0.0
    %730 = vmatprep.subr.mxu0 0.0
    %731 = vmatpush1.msra.mxu0 0.0
    %732 = vmatprep.subr.mxu0 0.0
    %733 = vmatpush1.msra.mxu0 0.0
    %734 = vmatprep.subr.mxu0 0.0
    %735 = vmatpush1.msra.mxu0 0.0
    %736 = vmatprep.subr.mxu0 0.0
    %737 = vmatpush1.msra.mxu0 0.0
    %738 = vmatprep.subr.mxu0 0.0
    %739 = vmatpush1.msra.mxu0 0.0
    %740 = vmatprep.subr.mxu0 0.0
    %741 = vmatpush1.msra.mxu0 0.0
    %742 = vmatprep.subr.mxu0 0.0
    %743 = vmatpush1.msra.mxu0 0.0
    %744 = vmatprep.subr.mxu0 0.0
    %745 = vmatpush1.msra.mxu0 0.0
    %746 = vmatprep.mubr.f32.mxu0 0.0
    %747 = vmatmul.mubr.f32.gmra.mrb[0].mxu0 %v680
    %v748 = vpop.f32.mrb[0].mxu0
    %v749 = vadd.f32 0.0, %v748
    %v750 = vpop.f32.mrb[0].mxu0
    %751 = vdwg.mxu0
    %v752 = vadd.f32 %v676, %v749
    %v753 = vxor.u32 %v752, 2147483648
    %v754 = vmul.f32 %v753, 1.442695
    %v755 = vpow.pop %v754
    %v756 = vadd.f32 %v755, 1.0
    %v757 = vrcp.pop %v756
    %v758 = vmul.f32 1.0, %v757
    %v759 = vtanh.pop %v752
    %v760 = vmul.f32 %v758, %v668
    %762 = vrot.lane.b32.xlu0 %v759, 32
    %v763 = vpop.permute.xlu0 %762
    %v765 = vmul.f32 %v758, %v763
    %767 = vrot.lane.b32.xlu0 %v765, 32
    %v768 = vpop.permute.xlu0 %767
    %v770 = vadd.f32 %v760, %v768
    %v771 = vtanh.pop %v770
    %773 = vrot.lane.b32.xlu0 %v771, 32
    %v774 = vpop.permute.xlu0 %773
    %v776 = vmul.f32 %v758, %v774
    %v777 = vld [vmem:[#allocation2] sm:$0xff]
    %v778 = vld [vmem:[#allocation2 + $0x8] sm:$0xff]
    %s779 = scalar_lea.vmem [#allocation2], 32
    %v780 = vld [vmem:[%s779] sm:$0xff]
    %v781 = vld [vmem:[%s779 + $0x8] sm:$0xff]
    %782 = vmatprep.subr.mxu0 0.0
    %783 = vmatpush1.msra.mxu0 %v261
    %784 = vmatprep.subr.mxu0 0.0
    %785 = vmatpush1.msra.mxu0 %v262
    %786 = vmatprep.subr.mxu0 0.0
    %787 = vmatpush1.msra.mxu0 %v263
    %788 = vmatprep.subr.mxu0 0.0
    %789 = vmatpush1.msra.mxu0 %v264
    %790 = vmatprep.subr.mxu0 0.0
    %791 = vmatpush1.msra.mxu0 0.0
    %792 = vmatprep.subr.mxu0 0.0
    %793 = vmatpush1.msra.mxu0 0.0
    %794 = vmatprep.subr.mxu0 0.0
    %795 = vmatpush1.msra.mxu0 0.0
    %796 = vmatprep.subr.mxu0 0.0
    %797 = vmatpush1.msra.mxu0 0.0
    %798 = vmatprep.subr.mxu0 0.0
    %799 = vmatpush1.msra.mxu0 0.0
    %800 = vmatprep.subr.mxu0 0.0
    %801 = vmatpush1.msra.mxu0 0.0
    %802 = vmatprep.subr.mxu0 0.0
    %803 = vmatpush1.msra.mxu0 0.0
    %804 = vmatprep.subr.mxu0 0.0
    %805 = vmatpush1.msra.mxu0 0.0
    %806 = vmatprep.subr.mxu0 0.0
    %807 = vmatpush1.msra.mxu0 0.0
    %808 = vmatprep.subr.mxu0 0.0
    %809 = vmatpush1.msra.mxu0 0.0
    %810 = vmatprep.subr.mxu0 0.0
    %811 = vmatpush1.msra.mxu0 0.0
    %812 = vmatprep.subr.mxu0 0.0
    %813 = vmatpush1.msra.mxu0 0.0
    %814 = vmatprep.subr.mxu0 0.0
    %815 = vmatpush1.msra.mxu0 0.0
    %816 = vmatprep.subr.mxu0 0.0
    %817 = vmatpush1.msra.mxu0 0.0
    %818 = vmatprep.subr.mxu0 0.0
    %819 = vmatpush1.msra.mxu0 0.0
    %820 = vmatprep.subr.mxu0 0.0
    %821 = vmatpush1.msra.mxu0 0.0
    %822 = vmatprep.subr.mxu0 0.0
    %823 = vmatpush1.msra.mxu0 0.0
    %824 = vmatprep.subr.mxu0 0.0
    %825 = vmatpush1.msra.mxu0 0.0
    %826 = vmatprep.subr.mxu0 0.0
    %827 = vmatpush1.msra.mxu0 0.0
    %828 = vmatprep.subr.mxu0 0.0
    %829 = vmatpush1.msra.mxu0 0.0
    %830 = vmatprep.subr.mxu0 0.0
    %831 = vmatpush1.msra.mxu0 0.0
    %832 = vmatprep.subr.mxu0 0.0
    %833 = vmatpush1.msra.mxu0 0.0
    %834 = vmatprep.subr.mxu0 0.0
    %835 = vmatpush1.msra.mxu0 0.0
    %836 = vmatprep.subr.mxu0 0.0
    %837 = vmatpush1.msra.mxu0 0.0
    %838 = vmatprep.subr.mxu0 0.0
    %839 = vmatpush1.msra.mxu0 0.0
    %840 = vmatprep.subr.mxu0 0.0
    %841 = vmatpush1.msra.mxu0 0.0
    %842 = vmatprep.subr.mxu0 0.0
    %843 = vmatpush1.msra.mxu0 0.0
    %844 = vmatprep.subr.mxu0 0.0
    %845 = vmatpush1.msra.mxu0 0.0
    %846 = vmatprep.mubr.f32.mxu0 0.0
    %847 = vmatmul.mubr.f32.gmra.mrb[0].mxu0 %v272
    %v848 = vpop.f32.mrb[0].mxu0
    %v849 = vadd.f32 0.0, %v848
    %v850 = vpop.f32.mrb[0].mxu0
    %851 = vdwg.mxu0
    %v852 = vadd.f32 %v777, %v849
    %v853 = vxor.u32 %v852, 2147483648
    %v854 = vmul.f32 %v853, 1.442695
    %v855 = vpow.pop %v854
    %v856 = vadd.f32 %v855, 1.0
    %v857 = vrcp.pop %v856
    %v858 = vmul.f32 1.0, %v857
    %v859 = vtanh.pop %v852
    %v860 = vmul.f32 %v858, 0.0
    %862 = vrot.lane.b32.xlu0 %v859, 32
    %v863 = vpop.permute.xlu0 %862
    %v865 = vmul.f32 %v858, %v863
    %867 = vrot.lane.b32.xlu0 %v865, 32
    %v868 = vpop.permute.xlu0 %867
    %v870 = vadd.f32 %v860, %v868
    %v871 = vtanh.pop %v870
    %873 = vrot.lane.b32.xlu0 %v871, 32
    %v874 = vpop.permute.xlu0 %873
    %v876 = vmul.f32 %v858, %v874
    %878 = vrot.lane.b32.xlu0 %v776, 64
    %v879 = vpop.permute.xlu0 %878
    %v880 = vsel %vm107, %v879, 0
    %882 = vmatprep.subr.mxu0 0.0
    %883 = vmatpush1.msra.mxu0 %v265
    %884 = vmatprep.subr.mxu0 0.0
    %885 = vmatpush1.msra.mxu0 %v266
    %886 = vmatprep.subr.mxu0 0.0
    %887 = vmatpush1.msra.mxu0 %v267
    %888 = vmatprep.subr.mxu0 0.0
    %889 = vmatpush1.msra.mxu0 %v268
    %890 = vmatprep.subr.mxu0 0.0
    %891 = vmatpush1.msra.mxu0 0.0
    %892 = vmatprep.subr.mxu0 0.0
    %893 = vmatpush1.msra.mxu0 0.0
    %894 = vmatprep.subr.mxu0 0.0
    %895 = vmatpush1.msra.mxu0 0.0
    %896 = vmatprep.subr.mxu0 0.0
    %897 = vmatpush1.msra.mxu0 0.0
    %898 = vmatprep.subr.mxu0 0.0
    %899 = vmatpush1.msra.mxu0 0.0
    %900 = vmatprep.subr.mxu0 0.0
    %901 = vmatpush1.msra.mxu0 0.0
    %902 = vmatprep.subr.mxu0 0.0
    %903 = vmatpush1.msra.mxu0 0.0
    %904 = vmatprep.subr.mxu0 0.0
    %905 = vmatpush1.msra.mxu0 0.0
    %906 = vmatprep.subr.mxu0 0.0
    %907 = vmatpush1.msra.mxu0 0.0
    %908 = vmatprep.subr.mxu0 0.0
    %909 = vmatpush1.msra.mxu0 0.0
    %910 = vmatprep.subr.mxu0 0.0
    %911 = vmatpush1.msra.mxu0 0.0
    %912 = vmatprep.subr.mxu0 0.0
    %913 = vmatpush1.msra.mxu0 0.0
    %914 = vmatprep.subr.mxu0 0.0
    %915 = vmatpush1.msra.mxu0 0.0
    %916 = vmatprep.subr.mxu0 0.0
    %917 = vmatpush1.msra.mxu0 0.0
    %918 = vmatprep.subr.mxu0 0.0
    %919 = vmatpush1.msra.mxu0 0.0
    %920 = vmatprep.subr.mxu0 0.0
    %921 = vmatpush1.msra.mxu0 0.0
    %922 = vmatprep.subr.mxu0 0.0
    %923 = vmatpush1.msra.mxu0 0.0
    %924 = vmatprep.subr.mxu0 0.0
    %925 = vmatpush1.msra.mxu0 0.0
    %926 = vmatprep.subr.mxu0 0.0
    %927 = vmatpush1.msra.mxu0 0.0
    %928 = vmatprep.subr.mxu0 0.0
    %929 = vmatpush1.msra.mxu0 0.0
    %930 = vmatprep.subr.mxu0 0.0
    %931 = vmatpush1.msra.mxu0 0.0
    %932 = vmatprep.subr.mxu0 0.0
    %933 = vmatpush1.msra.mxu0 0.0
    %934 = vmatprep.subr.mxu0 0.0
    %935 = vmatpush1.msra.mxu0 0.0
    %936 = vmatprep.subr.mxu0 0.0
    %937 = vmatpush1.msra.mxu0 0.0
    %938 = vmatprep.subr.mxu0 0.0
    %939 = vmatpush1.msra.mxu0 0.0
    %940 = vmatprep.subr.mxu0 0.0
    %941 = vmatpush1.msra.mxu0 0.0
    %942 = vmatprep.subr.mxu0 0.0
    %943 = vmatpush1.msra.mxu0 0.0
    %944 = vmatprep.subr.mxu0 0.0
    %945 = vmatpush1.msra.mxu0 0.0
    %946 = vmatprep.mubr.f32.mxu0 0.0
    %947 = vmatmul.mubr.f32.gmra.mrb[0].mxu0 %v880
    %v948 = vpop.f32.mrb[0].mxu0
    %v949 = vadd.f32 0.0, %v948
    %v950 = vpop.f32.mrb[0].mxu0
    %951 = vdwg.mxu0
    %v952 = vadd.f32 %v781, %v949
    %v953 = vxor.u32 %v952, 2147483648
    %v954 = vmul.f32 %v953, 1.442695
    %v955 = vpow.pop %v954
    %v956 = vadd.f32 %v955, 1.0
    %v957 = vrcp.pop %v956
    %v958 = vmul.f32 1.0, %v957
    %v959 = vtanh.pop %v952
    %v960 = vmul.f32 %v958, %v770
    %962 = vrot.lane.b32.xlu0 %v959, 32
    %v963 = vpop.permute.xlu0 %962
    %v965 = vmul.f32 %v958, %v963
    %967 = vrot.lane.b32.xlu0 %v965, 32
    %v968 = vpop.permute.xlu0 %967
    %v970 = vadd.f32 %v960, %v968
    %v971 = vtanh.pop %v970
    %973 = vrot.lane.b32.xlu0 %v971, 32
    %v974 = vpop.permute.xlu0 %973
    %v976 = vmul.f32 %v958, %v974
    %s977 = scalar_lea.vmem [#allocation2], 16
    %v978 = vld [vmem:[%s977] sm:$0xff]
    %v979 = vld [vmem:[%s977 + $0x8] sm:$0xff]
    %981 = vrot.lane.b32.xlu0 %v876, 64
    %v982 = vpop.permute.xlu0 %981
    %v983 = vsel %vm107, %v982, 0
    %985 = vmatprep.subr.mxu0 0.0
    %986 = vmatpush1.msra.mxu0 %v261
    %987 = vmatprep.subr.mxu0 0.0
    %988 = vmatpush1.msra.mxu0 %v262
    %989 = vmatprep.subr.mxu0 0.0
    %990 = vmatpush1.msra.mxu0 %v263
    %991 = vmatprep.subr.mxu0 0.0
    %992 = vmatpush1.msra.mxu0 %v264
    %993 = vmatprep.subr.mxu0 0.0
    %994 = vmatpush1.msra.mxu0 0.0
    %995 = vmatprep.subr.mxu0 0.0
    %996 = vmatpush1.msra.mxu0 0.0
    %997 = vmatprep.subr.mxu0 0.0
    %998 = vmatpush1.msra.mxu0 0.0
    %999 = vmatprep.subr.mxu0 0.0
    %1000 = vmatpush1.msra.mxu0 0.0
    %1001 = vmatprep.subr.mxu0 0.0
    %1002 = vmatpush1.msra.mxu0 0.0
    %1003 = vmatprep.subr.mxu0 0.0
    %1004 = vmatpush1.msra.mxu0 0.0
    %1005 = vmatprep.subr.mxu0 0.0
    %1006 = vmatpush1.msra.mxu0 0.0
    %1007 = vmatprep.subr.mxu0 0.0
    %1008 = vmatpush1.msra.mxu0 0.0
    %1009 = vmatprep.subr.mxu0 0.0
    %1010 = vmatpush1.msra.mxu0 0.0
    %1011 = vmatprep.subr.mxu0 0.0
    %1012 = vmatpush1.msra.mxu0 0.0
    %1013 = vmatprep.subr.mxu0 0.0
    %1014 = vmatpush1.msra.mxu0 0.0
    %1015 = vmatprep.subr.mxu0 0.0
    %1016 = vmatpush1.msra.mxu0 0.0
    %1017 = vmatprep.subr.mxu0 0.0
    %1018 = vmatpush1.msra.mxu0 0.0
    %1019 = vmatprep.subr.mxu0 0.0
    %1020 = vmatpush1.msra.mxu0 0.0
    %1021 = vmatprep.subr.mxu0 0.0
    %1022 = vmatpush1.msra.mxu0 0.0
    %1023 = vmatprep.subr.mxu0 0.0
    %1024 = vmatpush1.msra.mxu0 0.0
    %1025 = vmatprep.subr.mxu0 0.0
    %1026 = vmatpush1.msra.mxu0 0.0
    %1027 = vmatprep.subr.mxu0 0.0
    %1028 = vmatpush1.msra.mxu0 0.0
    %1029 = vmatprep.subr.mxu0 0.0
    %1030 = vmatpush1.msra.mxu0 0.0
    %1031 = vmatprep.subr.mxu0 0.0
    %1032 = vmatpush1.msra.mxu0 0.0
    %1033 = vmatprep.subr.mxu0 0.0
    %1034 = vmatpush1.msra.mxu0 0.0
    %1035 = vmatprep.subr.mxu0 0.0
    %1036 = vmatpush1.msra.mxu0 0.0
    %1037 = vmatprep.subr.mxu0 0.0
    %1038 = vmatpush1.msra.mxu0 0.0
    %1039 = vmatprep.subr.mxu0 0.0
    %1040 = vmatpush1.msra.mxu0 0.0
    %1041 = vmatprep.subr.mxu0 0.0
    %1042 = vmatpush1.msra.mxu0 0.0
    %1043 = vmatprep.subr.mxu0 0.0
    %1044 = vmatpush1.msra.mxu0 0.0
    %1045 = vmatprep.subr.mxu0 0.0
    %1046 = vmatpush1.msra.mxu0 0.0
    %1047 = vmatprep.subr.mxu0 0.0
    %1048 = vmatpush1.msra.mxu0 0.0
    %1049 = vmatprep.mubr.f32.mxu0 0.0
    %1050 = vmatmul.mubr.f32.gmra.mrb[0].mxu0 %v983
    %v1051 = vpop.f32.mrb[0].mxu0
    %v1052 = vadd.f32 0.0, %v1051
    %v1053 = vpop.f32.mrb[0].mxu0
    %1054 = vdwg.mxu0
    %v1055 = vadd.f32 %v978, %v1052
    %v1056 = vxor.u32 %v1055, 2147483648
    %v1057 = vmul.f32 %v1056, 1.442695
    %v1058 = vpow.pop %v1057
    %v1059 = vadd.f32 %v1058, 1.0
    %v1060 = vrcp.pop %v1059
    %v1061 = vmul.f32 1.0, %v1060
    %v1062 = vtanh.pop %v1055
    %v1063 = vmul.f32 %v1061, %v870
    %1065 = vrot.lane.b32.xlu0 %v1062, 32
    %v1066 = vpop.permute.xlu0 %1065
    %v1068 = vmul.f32 %v1061, %v1066
    %1070 = vrot.lane.b32.xlu0 %v1068, 32
    %v1071 = vpop.permute.xlu0 %1070
    %v1073 = vadd.f32 %v1063, %v1071
    %v1074 = vtanh.pop %v1073
    %1076 = vrot.lane.b32.xlu0 %v1074, 32
    %v1077 = vpop.permute.xlu0 %1076
    %v1079 = vmul.f32 %v1061, %v1077
    %1081 = vrot.lane.b32.xlu0 %v976, 64
    %v1082 = vpop.permute.xlu0 %1081
    %v1083 = vsel %vm107, %v1082, 0
    %1085 = vmatprep.subr.mxu0 0.0
    %1086 = vmatpush1.msra.mxu0 %v265
    %1087 = vmatprep.subr.mxu0 0.0
    %1088 = vmatpush1.msra.mxu0 %v266
    %1089 = vmatprep.subr.mxu0 0.0
    %1090 = vmatpush1.msra.mxu0 %v267
    %1091 = vmatprep.subr.mxu0 0.0
    %1092 = vmatpush1.msra.mxu0 %v268
    %1093 = vmatprep.subr.mxu0 0.0
    %1094 = vmatpush1.msra.mxu0 0.0
    %1095 = vmatprep.subr.mxu0 0.0
    %1096 = vmatpush1.msra.mxu0 0.0
    %1097 = vmatprep.subr.mxu0 0.0
    %1098 = vmatpush1.msra.mxu0 0.0
    %1099 = vmatprep.subr.mxu0 0.0
    %1100 = vmatpush1.msra.mxu0 0.0
    %1101 = vmatprep.subr.mxu0 0.0
    %1102 = vmatpush1.msra.mxu0 0.0
    %1103 = vmatprep.subr.mxu0 0.0
    %1104 = vmatpush1.msra.mxu0 0.0
    %1105 = vmatprep.subr.mxu0 0.0
    %1106 = vmatpush1.msra.mxu0 0.0
    %1107 = vmatprep.subr.mxu0 0.0
    %1108 = vmatpush1.msra.mxu0 0.0
    %1109 = vmatprep.subr.mxu0 0.0
    %1110 = vmatpush1.msra.mxu0 0.0
    %1111 = vmatprep.subr.mxu0 0.0
    %1112 = vmatpush1.msra.mxu0 0.0
    %1113 = vmatprep.subr.mxu0 0.0
    %1114 = vmatpush1.msra.mxu0 0.0
    %1115 = vmatprep.subr.mxu0 0.0
    %1116 = vmatpush1.msra.mxu0 0.0
    %1117 = vmatprep.subr.mxu0 0.0
    %1118 = vmatpush1.msra.mxu0 0.0
    %1119 = vmatprep.subr.mxu0 0.0
    %1120 = vmatpush1.msra.mxu0 0.0
    %1121 = vmatprep.subr.mxu0 0.0
    %1122 = vmatpush1.msra.mxu0 0.0
    %1123 = vmatprep.subr.mxu0 0.0
    %1124 = vmatpush1.msra.mxu0 0.0
    %1125 = vmatprep.subr.mxu0 0.0
    %1126 = vmatpush1.msra.mxu0 0.0
    %1127 = vmatprep.subr.mxu0 0.0
    %1128 = vmatpush1.msra.mxu0 0.0
    %1129 = vmatprep.subr.mxu0 0.0
    %1130 = vmatpush1.msra.mxu0 0.0
    %1131 = vmatprep.subr.mxu0 0.0
    %1132 = vmatpush1.msra.mxu0 0.0
    %1133 = vmatprep.subr.mxu0 0.0
    %1134 = vmatpush1.msra.mxu0 0.0
    %1135 = vmatprep.subr.mxu0 0.0
    %1136 = vmatpush1.msra.mxu0 0.0
    %1137 = vmatprep.subr.mxu0 0.0
    %1138 = vmatpush1.msra.mxu0 0.0
    %1139 = vmatprep.subr.mxu0 0.0
    %1140 = vmatpush1.msra.mxu0 0.0
    %1141 = vmatprep.subr.mxu0 0.0
    %1142 = vmatpush1.msra.mxu0 0.0
    %1143 = vmatprep.subr.mxu0 0.0
    %1144 = vmatpush1.msra.mxu0 0.0
    %1145 = vmatprep.subr.mxu0 0.0
    %1146 = vmatpush1.msra.mxu0 0.0
    %1147 = vmatprep.subr.mxu0 0.0
    %1148 = vmatpush1.msra.mxu0 0.0
    %1149 = vmatprep.mubr.f32.mxu0 0.0
    %1150 = vmatmul.mubr.f32.gmra.mrb[0].mxu0 %v1083
    %v1151 = vpop.f32.mrb[0].mxu0
    %v1152 = vadd.f32 0.0, %v1151
    %v1153 = vpop.f32.mrb[0].mxu0
    %1154 = vdwg.mxu0
    %v1155 = vadd.f32 %v979, %v1152
    %v1156 = vxor.u32 %v1155, 2147483648
    %v1157 = vmul.f32 %v1156, 1.442695
    %v1158 = vpow.pop %v1157
    %v1159 = vadd.f32 %v1158, 1.0
    %v1160 = vrcp.pop %v1159
    %v1161 = vmul.f32 1.0, %v1160
    %v1162 = vtanh.pop %v1155
    %v1163 = vmul.f32 %v1161, %v970
    %1165 = vrot.lane.b32.xlu0 %v1162, 32
    %v1166 = vpop.permute.xlu0 %1165
    %v1168 = vmul.f32 %v1161, %v1166
    %1170 = vrot.lane.b32.xlu0 %v1168, 32
    %v1171 = vpop.permute.xlu0 %1170
    %v1173 = vadd.f32 %v1163, %v1171
    %v1174 = vtanh.pop %v1173
    %1176 = vrot.lane.b32.xlu0 %v1174, 32
    %v1177 = vpop.permute.xlu0 %1176
    %v1179 = vmul.f32 %v1161, %v1177
    %1181 = vrot.lane.b32.xlu0 %v1079, 64
    %v1182 = vpop.permute.xlu0 %1181
    %v1183 = vsel %vm107, %v1182, 0
    %1185 = vmatprep.subr.mxu0 0.0
    %1186 = vmatpush1.msra.mxu0 %v261
    %1187 = vmatprep.subr.mxu0 0.0
    %1188 = vmatpush1.msra.mxu0 %v262
    %1189 = vmatprep.subr.mxu0 0.0
    %1190 = vmatpush1.msra.mxu0 %v263
    %1191 = vmatprep.subr.mxu0 0.0
    %1192 = vmatpush1.msra.mxu0 %v264
    %1193 = vmatprep.subr.mxu0 0.0
    %1194 = vmatpush1.msra.mxu0 0.0
    %1195 = vmatprep.subr.mxu0 0.0
    %1196 = vmatpush1.msra.mxu0 0.0
    %1197 = vmatprep.subr.mxu0 0.0
    %1198 = vmatpush1.msra.mxu0 0.0
    %1199 = vmatprep.subr.mxu0 0.0
    %1200 = vmatpush1.msra.mxu0 0.0
    %1201 = vmatprep.subr.mxu0 0.0
    %1202 = vmatpush1.msra.mxu0 0.0
    %1203 = vmatprep.subr.mxu0 0.0
    %1204 = vmatpush1.msra.mxu0 0.0
    %1205 = vmatprep.subr.mxu0 0.0
    %1206 = vmatpush1.msra.mxu0 0.0
    %1207 = vmatprep.subr.mxu0 0.0
    %1208 = vmatpush1.msra.mxu0 0.0
    %1209 = vmatprep.subr.mxu0 0.0
    %1210 = vmatpush1.msra.mxu0 0.0
    %1211 = vmatprep.subr.mxu0 0.0
    %1212 = vmatpush1.msra.mxu0 0.0
    %1213 = vmatprep.subr.mxu0 0.0
    %1214 = vmatpush1.msra.mxu0 0.0
    %1215 = vmatprep.subr.mxu0 0.0
    %1216 = vmatpush1.msra.mxu0 0.0
    %1217 = vmatprep.subr.mxu0 0.0
    %1218 = vmatpush1.msra.mxu0 0.0
    %1219 = vmatprep.subr.mxu0 0.0
    %1220 = vmatpush1.msra.mxu0 0.0
    %1221 = vmatprep.subr.mxu0 0.0
    %1222 = vmatpush1.msra.mxu0 0.0
    %1223 = vmatprep.subr.mxu0 0.0
    %1224 = vmatpush1.msra.mxu0 0.0
    %1225 = vmatprep.subr.mxu0 0.0
    %1226 = vmatpush1.msra.mxu0 0.0
    %1227 = vmatprep.subr.mxu0 0.0
    %1228 = vmatpush1.msra.mxu0 0.0
    %1229 = vmatprep.subr.mxu0 0.0
    %1230 = vmatpush1.msra.mxu0 0.0
    %1231 = vmatprep.subr.mxu0 0.0
    %1232 = vmatpush1.msra.mxu0 0.0
    %1233 = vmatprep.subr.mxu0 0.0
    %1234 = vmatpush1.msra.mxu0 0.0
    %1235 = vmatprep.subr.mxu0 0.0
    %1236 = vmatpush1.msra.mxu0 0.0
    %1237 = vmatprep.subr.mxu0 0.0
    %1238 = vmatpush1.msra.mxu0 0.0
    %1239 = vmatprep.subr.mxu0 0.0
    %1240 = vmatpush1.msra.mxu0 0.0
    %1241 = vmatprep.subr.mxu0 0.0
    %1242 = vmatpush1.msra.mxu0 0.0
    %1243 = vmatprep.subr.mxu0 0.0
    %1244 = vmatpush1.msra.mxu0 0.0
    %1245 = vmatprep.subr.mxu0 0.0
    %1246 = vmatpush1.msra.mxu0 0.0
    %1247 = vmatprep.subr.mxu0 0.0
    %1248 = vmatpush1.msra.mxu0 0.0
    %1249 = vmatprep.mubr.f32.mxu0 0.0
    %1250 = vmatmul.mubr.f32.gmra.mrb[0].mxu0 %v1183
    %v1251 = vpop.f32.mrb[0].mxu0
    %v1252 = vadd.f32 0.0, %v1251
    %v1253 = vpop.f32.mrb[0].mxu0
    %1254 = vdwg.mxu0
    %v1255 = vadd.f32 %v780, %v1252
    %v1256 = vxor.u32 %v1255, 2147483648
    %v1257 = vmul.f32 %v1256, 1.442695
    %v1258 = vpow.pop %v1257
    %v1259 = vadd.f32 %v1258, 1.0
    %v1260 = vrcp.pop %v1259
    %v1261 = vmul.f32 1.0, %v1260
    %v1262 = vtanh.pop %v1255
    %v1263 = vmul.f32 %v1261, %v1073
    %1265 = vrot.lane.b32.xlu0 %v1262, 32
    %v1266 = vpop.permute.xlu0 %1265
    %v1268 = vmul.f32 %v1261, %v1266
    %1270 = vrot.lane.b32.xlu0 %v1268, 32
    %v1271 = vpop.permute.xlu0 %1270
    %v1273 = vadd.f32 %v1263, %v1271
    %v1274 = vtanh.pop %v1273
    %1276 = vrot.lane.b32.xlu0 %v1274, 32
    %v1277 = vpop.permute.xlu0 %1276
    %v1279 = vmul.f32 %v1261, %v1277
    %1281 = vrot.lane.b32.xlu0 %v1179, 64
    %v1282 = vpop.permute.xlu0 %1281
    %v1283 = vsel %vm107, %v1282, 0
    %1285 = vmatprep.subr.mxu0 0.0
    %1286 = vmatpush1.msra.mxu0 %v265
    %1287 = vmatprep.subr.mxu0 0.0
    %1288 = vmatpush1.msra.mxu0 %v266
    %1289 = vmatprep.subr.mxu0 0.0
    %1290 = vmatpush1.msra.mxu0 %v267
    %1291 = vmatprep.subr.mxu0 0.0
    %1292 = vmatpush1.msra.mxu0 %v268
    %1293 = vmatprep.subr.mxu0 0.0
    %1294 = vmatpush1.msra.mxu0 0.0
    %1295 = vmatprep.subr.mxu0 0.0
    %1296 = vmatpush1.msra.mxu0 0.0
    %1297 = vmatprep.subr.mxu0 0.0
    %1298 = vmatpush1.msra.mxu0 0.0
    %1299 = vmatprep.subr.mxu0 0.0
    %1300 = vmatpush1.msra.mxu0 0.0
    %1301 = vmatprep.subr.mxu0 0.0
    %1302 = vmatpush1.msra.mxu0 0.0
    %1303 = vmatprep.subr.mxu0 0.0
    %1304 = vmatpush1.msra.mxu0 0.0
    %1305 = vmatprep.subr.mxu0 0.0
    %1306 = vmatpush1.msra.mxu0 0.0
    %1307 = vmatprep.subr.mxu0 0.0
    %1308 = vmatpush1.msra.mxu0 0.0
    %1309 = vmatprep.subr.mxu0 0.0
    %1310 = vmatpush1.msra.mxu0 0.0
    %1311 = vmatprep.subr.mxu0 0.0
    %1312 = vmatpush1.msra.mxu0 0.0
    %1313 = vmatprep.subr.mxu0 0.0
    %1314 = vmatpush1.msra.mxu0 0.0
    %1315 = vmatprep.subr.mxu0 0.0
    %1316 = vmatpush1.msra.mxu0 0.0
    %1317 = vmatprep.subr.mxu0 0.0
    %1318 = vmatpush1.msra.mxu0 0.0
    %1319 = vmatprep.subr.mxu0 0.0
    %1320 = vmatpush1.msra.mxu0 0.0
    %1321 = vmatprep.subr.mxu0 0.0
    %1322 = vmatpush1.msra.mxu0 0.0
    %1323 = vmatprep.subr.mxu0 0.0
    %1324 = vmatpush1.msra.mxu0 0.0
    %1325 = vmatprep.subr.mxu0 0.0
    %1326 = vmatpush1.msra.mxu0 0.0
    %1327 = vmatprep.subr.mxu0 0.0
    %1328 = vmatpush1.msra.mxu0 0.0
    %1329 = vmatprep.subr.mxu0 0.0
    %1330 = vmatpush1.msra.mxu0 0.0
    %1331 = vmatprep.subr.mxu0 0.0
    %1332 = vmatpush1.msra.mxu0 0.0
    %1333 = vmatprep.subr.mxu0 0.0
    %1334 = vmatpush1.msra.mxu0 0.0
    %1335 = vmatprep.subr.mxu0 0.0
    %1336 = vmatpush1.msra.mxu0 0.0
    %1337 = vmatprep.subr.mxu0 0.0
    %1338 = vmatpush1.msra.mxu0 0.0
    %1339 = vmatprep.subr.mxu0 0.0
    %1340 = vmatpush1.msra.mxu0 0.0
    %1341 = vmatprep.subr.mxu0 0.0
    %1342 = vmatpush1.msra.mxu0 0.0
    %1343 = vmatprep.subr.mxu0 0.0
    %1344 = vmatpush1.msra.mxu0 0.0
    %1345 = vmatprep.subr.mxu0 0.0
    %1346 = vmatpush1.msra.mxu0 0.0
    %1347 = vmatprep.subr.mxu0 0.0
    %1348 = vmatpush1.msra.mxu0 0.0
    %1349 = vmatprep.mubr.f32.mxu0 0.0
    %1350 = vmatmul.mubr.f32.gmra.mrb[0].mxu0 %v1283
    %v1351 = vpop.f32.mrb[0].mxu0
    %v1352 = vadd.f32 0.0, %v1351
    %v1353 = vpop.f32.mrb[0].mxu0
    %1354 = vdwg.mxu0
    %v1355 = vadd.f32 %v778, %v1352
    %v1356 = vxor.u32 %v1355, 2147483648
    %v1357 = vmul.f32 %v1356, 1.442695
    %v1358 = vpow.pop %v1357
    %v1359 = vadd.f32 %v1358, 1.0
    %v1360 = vrcp.pop %v1359
    %v1361 = vmul.f32 1.0, %v1360
    %v1362 = vtanh.pop %v1355
    %v1363 = vmul.f32 %v1361, %v1173
    %1365 = vrot.lane.b32.xlu0 %v1362, 32
    %v1366 = vpop.permute.xlu0 %1365
    %v1368 = vmul.f32 %v1361, %v1366
    %1370 = vrot.lane.b32.xlu0 %v1368, 32
    %v1371 = vpop.permute.xlu0 %1370
    %v1373 = vadd.f32 %v1363, %v1371
    %v1374 = vtanh.pop %v1373
    %1376 = vrot.lane.b32.xlu0 %v1374, 32
    %v1377 = vpop.permute.xlu0 %1376
    %v1379 = vmul.f32 %v1361, %v1377
    %v1380 = vadd.f32 %v876, %v1379
    %v1381 = vadd.f32 %v1079, %v1179
    %v1382 = vadd.f32 %v1279, %v976
    %v1383 = vld [vmem:[%s5] sm:$0xff]
    %v1384 = vld [vmem:[%s5 + $0x8] sm:$0xff]
    %v1385 = vld [vmem:[%s5 + $0x10] sm:$0xff]
    %v1386 = vld [vmem:[%s5 + $0x18] sm:$0xff]
    %v1387 = vld [vmem:[%s6] sm:$0x1]
    %v1389 = vlaneseq
    %v1390 = vshrl.u32 %v1389, 7
    %v1391 = vsub.s32 0, %v1390
    %v1392 = vrot.slane %v1387, %v1391
    %1397 = vrot.lane.b32.xlu0 %v1380, 64
    %v1398 = vpop.permute.xlu0 %1397
    %1399 = vrot.lane.b32.xlu0 %v1381, 64
    %v1400 = vpop.permute.xlu0 %1399
    %1401 = vrot.lane.b32.xlu0 %v1382, 64
    %v1402 = vpop.permute.xlu0 %1401
    %v1403 = vsel %vm107, %v1398, 0
    %v1405 = vsel %vm107, %v1400, 0
    %v1407 = vsel %vm107, %v1402, 0
    %1409 = vmatprep.subr.mxu0 0.0
    %1410 = vmatpush1.msra.mxu0 %v1383
    %1411 = vmatprep.subr.mxu0 0.0
    %1412 = vmatpush1.msra.mxu0 %v1384
    %1413 = vmatprep.subr.mxu0 0.0
    %1414 = vmatpush1.msra.mxu0 %v1385
    %1415 = vmatprep.subr.mxu0 0.0
    %1416 = vmatpush1.msra.mxu0 %v1386
    %1417 = vmatprep.subr.mxu0 0.0
    %1418 = vmatpush1.msra.mxu0 0.0
    %1419 = vmatprep.subr.mxu0 0.0
    %1420 = vmatpush1.msra.mxu0 0.0
    %1421 = vmatprep.subr.mxu0 0.0
    %1422 = vmatpush1.msra.mxu0 0.0
    %1423 = vmatprep.subr.mxu0 0.0
    %1424 = vmatpush1.msra.mxu0 0.0
    %1425 = vmatprep.subr.mxu0 0.0
    %1426 = vmatpush1.msra.mxu0 0.0
    %1427 = vmatprep.subr.mxu0 0.0
    %1428 = vmatpush1.msra.mxu0 0.0
    %1429 = vmatprep.subr.mxu0 0.0
    %1430 = vmatpush1.msra.mxu0 0.0
    %1431 = vmatprep.subr.mxu0 0.0
    %1432 = vmatpush1.msra.mxu0 0.0
    %1433 = vmatprep.subr.mxu0 0.0
    %1434 = vmatpush1.msra.mxu0 0.0
    %1435 = vmatprep.subr.mxu0 0.0
    %1436 = vmatpush1.msra.mxu0 0.0
    %1437 = vmatprep.subr.mxu0 0.0
    %1438 = vmatpush1.msra.mxu0 0.0
    %1439 = vmatprep.subr.mxu0 0.0
    %1440 = vmatpush1.msra.mxu0 0.0
    %1441 = vmatprep.subr.mxu0 0.0
    %1442 = vmatpush1.msra.mxu0 0.0
    %1443 = vmatprep.subr.mxu0 0.0
    %1444 = vmatpush1.msra.mxu0 0.0
    %1445 = vmatprep.subr.mxu0 0.0
    %1446 = vmatpush1.msra.mxu0 0.0
    %1447 = vmatprep.subr.mxu0 0.0
    %1448 = vmatpush1.msra.mxu0 0.0
    %1449 = vmatprep.subr.mxu0 0.0
    %1450 = vmatpush1.msra.mxu0 0.0
    %1451 = vmatprep.subr.mxu0 0.0
    %1452 = vmatpush1.msra.mxu0 0.0
    %1453 = vmatprep.subr.mxu0 0.0
    %1454 = vmatpush1.msra.mxu0 0.0
    %1455 = vmatprep.subr.mxu0 0.0
    %1456 = vmatpush1.msra.mxu0 0.0
    %1457 = vmatprep.subr.mxu0 0.0
    %1458 = vmatpush1.msra.mxu0 0.0
    %1459 = vmatprep.subr.mxu0 0.0
    %1460 = vmatpush1.msra.mxu0 0.0
    %1461 = vmatprep.subr.mxu0 0.0
    %1462 = vmatpush1.msra.mxu0 0.0
    %1463 = vmatprep.subr.mxu0 0.0
    %1464 = vmatpush1.msra.mxu0 0.0
    %1465 = vmatprep.subr.mxu0 0.0
    %1466 = vmatpush1.msra.mxu0 0.0
    %1467 = vmatprep.subr.mxu0 0.0
    %1468 = vmatpush1.msra.mxu0 0.0
    %1469 = vmatprep.subr.mxu0 0.0
    %1470 = vmatpush1.msra.mxu0 0.0
    %1471 = vmatprep.subr.mxu0 0.0
    %1472 = vmatpush1.msra.mxu0 0.0
    %1473 = vmatprep.mubr.f32.mxu0 0.0
    %1474 = vmatmul.mubr.f32.gmra.mrb[0].mxu0 %v1403
    %v1475 = vpop.f32.mrb[0].mxu0
    %v1476 = vadd.f32 %v1392, %v1475
    %v1477 = vpop.f32.mrb[0].mxu0
    %1478 = vmatprep.mubr.f32.mxu0 0.0
    %1479 = vmatmul.mubr.f32.gmra.mrb[0].mxu0 %v1405
    %v1480 = vpop.f32.mrb[0].mxu0
    %v1481 = vadd.f32 %v1392, %v1480
    %v1482 = vpop.f32.mrb[0].mxu0
    %1483 = vmatprep.mubr.f32.mxu0 0.0
    %1484 = vmatmul.mubr.f32.gmra.mrb[0].mxu0 %v1407
    %v1485 = vpop.f32.mrb[0].mxu0
    %v1486 = vadd.f32 %v1392, %v1485
    %v1487 = vpop.f32.mrb[0].mxu0
    %1488 = vdwg.mxu0
    %v1489 = vtanh.pop %v1476
    %v1490 = vtanh.pop %v1481
    %v1491 = vtanh.pop %v1486
    %v1492 = vmul.f32 %v1489, %v1490
    %v1493 = vmul.f32 %v1489, %v1491
    %v1494 = vmul.f32 %v1490, %v1491
    %v1495 = vld [vmem:[%s7] sm:$0xff]
    %v1496 = vld [vmem:[%s7 + $0x8] sm:$0xff]
    %v1497 = vld [vmem:[%s8] sm:$0x1]
    %v1499 = vlaneseq
    %v1500 = vshrl.u32 %v1499, 7
    %v1501 = vsub.s32 0, %v1500
    %v1502 = vrot.slane %v1497, %v1501
    %vm1504 = vcmask 130048
    %v1506 = vsel %vm1504, %v1492, 0
    %v1509 = vsel %vm1504, %v1493, 0
    %v1512 = vsel %vm1504, %v1494, 0
    %1514 = vmatprep.subr.mxu0 0.0
    %1515 = vmatpush1.msra.mxu0 %v1495
    %1516 = vmatprep.subr.mxu0 0.0
    %1517 = vmatpush1.msra.mxu0 %v1496
    %1518 = vmatprep.subr.mxu0 0.0
    %1519 = vmatpush1.msra.mxu0 0.0
    %1520 = vmatprep.subr.mxu0 0.0
    %1521 = vmatpush1.msra.mxu0 0.0
    %1522 = vmatprep.subr.mxu0 0.0
    %1523 = vmatpush1.msra.mxu0 0.0
    %1524 = vmatprep.subr.mxu0 0.0
    %1525 = vmatpush1.msra.mxu0 0.0
    %1526 = vmatprep.subr.mxu0 0.0
    %1527 = vmatpush1.msra.mxu0 0.0
    %1528 = vmatprep.subr.mxu0 0.0
    %1529 = vmatpush1.msra.mxu0 0.0
    %1530 = vmatprep.subr.mxu0 0.0
    %1531 = vmatpush1.msra.mxu0 0.0
    %1532 = vmatprep.subr.mxu0 0.0
    %1533 = vmatpush1.msra.mxu0 0.0
    %1534 = vmatprep.subr.mxu0 0.0
    %1535 = vmatpush1.msra.mxu0 0.0
    %1536 = vmatprep.subr.mxu0 0.0
    %1537 = vmatpush1.msra.mxu0 0.0
    %1538 = vmatprep.subr.mxu0 0.0
    %1539 = vmatpush1.msra.mxu0 0.0
    %1540 = vmatprep.subr.mxu0 0.0
    %1541 = vmatpush1.msra.mxu0 0.0
    %1542 = vmatprep.subr.mxu0 0.0
    %1543 = vmatpush1.msra.mxu0 0.0
    %1544 = vmatprep.subr.mxu0 0.0
    %1545 = vmatpush1.msra.mxu0 0.0
    %1546 = vmatprep.subr.mxu0 0.0
    %1547 = vmatpush1.msra.mxu0 0.0
    %1548 = vmatprep.subr.mxu0 0.0
    %1549 = vmatpush1.msra.mxu0 0.0
    %1550 = vmatprep.subr.mxu0 0.0
    %1551 = vmatpush1.msra.mxu0 0.0
    %1552 = vmatprep.subr.mxu0 0.0
    %1553 = vmatpush1.msra.mxu0 0.0
    %1554 = vmatprep.subr.mxu0 0.0
    %1555 = vmatpush1.msra.mxu0 0.0
    %1556 = vmatprep.subr.mxu0 0.0
    %1557 = vmatpush1.msra.mxu0 0.0
    %1558 = vmatprep.subr.mxu0 0.0
    %1559 = vmatpush1.msra.mxu0 0.0
    %1560 = vmatprep.subr.mxu0 0.0
    %1561 = vmatpush1.msra.mxu0 0.0
    %1562 = vmatprep.subr.mxu0 0.0
    %1563 = vmatpush1.msra.mxu0 0.0
    %1564 = vmatprep.subr.mxu0 0.0
    %1565 = vmatpush1.msra.mxu0 0.0
    %1566 = vmatprep.subr.mxu0 0.0
    %1567 = vmatpush1.msra.mxu0 0.0
    %1568 = vmatprep.subr.mxu0 0.0
    %1569 = vmatpush1.msra.mxu0 0.0
    %1570 = vmatprep.subr.mxu0 0.0
    %1571 = vmatpush1.msra.mxu0 0.0
    %1572 = vmatprep.subr.mxu0 0.0
    %1573 = vmatpush1.msra.mxu0 0.0
    %1574 = vmatprep.subr.mxu0 0.0
    %1575 = vmatpush1.msra.mxu0 0.0
    %1576 = vmatprep.subr.mxu0 0.0
    %1577 = vmatpush1.msra.mxu0 0.0
    %1578 = vmatprep.mubr.f32.mxu0 0.0
    %1579 = vmatmul.mubr.f32.gmra.mrb[0].mxu0 %v1506
    %v1580 = vpop.f32.mrb[0].mxu0
    %v1581 = vadd.f32 %v1502, %v1580
    %v1582 = vpop.f32.mrb[0].mxu0
    %1583 = vmatprep.mubr.f32.mxu0 0.0
    %1584 = vmatmul.mubr.f32.gmra.mrb[0].mxu0 %v1509
    %v1585 = vpop.f32.mrb[0].mxu0
    %v1586 = vadd.f32 %v1502, %v1585
    %v1587 = vpop.f32.mrb[0].mxu0
    %1588 = vmatprep.mubr.f32.mxu0 0.0
    %1589 = vmatmul.mubr.f32.gmra.mrb[0].mxu0 %v1512
    %v1590 = vpop.f32.mrb[0].mxu0
    %v1591 = vadd.f32 %v1502, %v1590
    %v1592 = vpop.f32.mrb[0].mxu0
    %1593 = vdwg.mxu0
    %v1594 = vtanh.pop %v1581
    %v1595 = vtanh.pop %v1586
    %v1596 = vtanh.pop %v1591
    %v1597 = vld [vmem:[%s9] sm:$0xff]
    %v1598 = vld [vmem:[#allocation3] sm:$0x1]
    %v1600 = vlaneseq
    %v1601 = vshrl.u32 %v1600, 7
    %v1602 = vsub.s32 0, %v1601
    %v1603 = vrot.slane %v1598, %v1602
    %vm1605 = vcmask 64512
    %v1607 = vsel %vm1605, %v1594, 0
    %v1610 = vsel %vm1605, %v1595, 0
    %v1613 = vsel %vm1605, %v1596, 0
    %1615 = vmatprep.subr.mxu0 0.0
    %1616 = vmatpush1.msra.mxu0 %v1597
    %1617 = vmatprep.subr.mxu0 0.0
    %1618 = vmatpush1.msra.mxu0 0.0
    %1619 = vmatprep.subr.mxu0 0.0
    %1620 = vmatpush1.msra.mxu0 0.0
    %1621 = vmatprep.subr.mxu0 0.0
    %1622 = vmatpush1.msra.mxu0 0.0
    %1623 = vmatprep.subr.mxu0 0.0
    %1624 = vmatpush1.msra.mxu0 0.0
    %1625 = vmatprep.subr.mxu0 0.0
    %1626 = vmatpush1.msra.mxu0 0.0
    %1627 = vmatprep.subr.mxu0 0.0
    %1628 = vmatpush1.msra.mxu0 0.0
    %1629 = vmatprep.subr.mxu0 0.0
    %1630 = vmatpush1.msra.mxu0 0.0
    %1631 = vmatprep.subr.mxu0 0.0
    %1632 = vmatpush1.msra.mxu0 0.0
    %1633 = vmatprep.subr.mxu0 0.0
    %1634 = vmatpush1.msra.mxu0 0.0
    %1635 = vmatprep.subr.mxu0 0.0
    %1636 = vmatpush1.msra.mxu0 0.0
    %1637 = vmatprep.subr.mxu0 0.0
    %1638 = vmatpush1.msra.mxu0 0.0
    %1639 = vmatprep.subr.mxu0 0.0
    %1640 = vmatpush1.msra.mxu0 0.0
    %1641 = vmatprep.subr.mxu0 0.0
    %1642 = vmatpush1.msra.mxu0 0.0
    %1643 = vmatprep.subr.mxu0 0.0
    %1644 = vmatpush1.msra.mxu0 0.0
    %1645 = vmatprep.subr.mxu0 0.0
    %1646 = vmatpush1.msra.mxu0 0.0
    %1647 = vmatprep.subr.mxu0 0.0
    %1648 = vmatpush1.msra.mxu0 0.0
    %1649 = vmatprep.subr.mxu0 0.0
    %1650 = vmatpush1.msra.mxu0 0.0
    %1651 = vmatprep.subr.mxu0 0.0
    %1652 = vmatpush1.msra.mxu0 0.0
    %1653 = vmatprep.subr.mxu0 0.0
    %1654 = vmatpush1.msra.mxu0 0.0
    %1655 = vmatprep.subr.mxu0 0.0
    %1656 = vmatpush1.msra.mxu0 0.0
    %1657 = vmatprep.subr.mxu0 0.0
    %1658 = vmatpush1.msra.mxu0 0.0
    %1659 = vmatprep.subr.mxu0 0.0
    %1660 = vmatpush1.msra.mxu0 0.0
    %1661 = vmatprep.subr.mxu0 0.0
    %1662 = vmatpush1.msra.mxu0 0.0
    %1663 = vmatprep.subr.mxu0 0.0
    %1664 = vmatpush1.msra.mxu0 0.0
    %1665 = vmatprep.subr.mxu0 0.0
    %1666 = vmatpush1.msra.mxu0 0.0
    %1667 = vmatprep.subr.mxu0 0.0
    %1668 = vmatpush1.msra.mxu0 0.0
    %1669 = vmatprep.subr.mxu0 0.0
    %1670 = vmatpush1.msra.mxu0 0.0
    %1671 = vmatprep.subr.mxu0 0.0
    %1672 = vmatpush1.msra.mxu0 0.0
    %1673 = vmatprep.subr.mxu0 0.0
    %1674 = vmatpush1.msra.mxu0 0.0
    %1675 = vmatprep.subr.mxu0 0.0
    %1676 = vmatpush1.msra.mxu0 0.0
    %1677 = vmatprep.subr.mxu0 0.0
    %1678 = vmatpush1.msra.mxu0 0.0
    %1679 = vmatprep.mubr.f32.mxu0 0.0
    %1680 = vmatmul.mubr.f32.gmra.mrb[0].mxu0 %v1607
    %v1681 = vpop.f32.mrb[0].mxu0
    %v1682 = vadd.f32 %v1603, %v1681
    %v1683 = vpop.f32.mrb[0].mxu0
    %1684 = vmatprep.mubr.f32.mxu0 0.0
    %1685 = vmatmul.mubr.f32.gmra.mrb[0].mxu0 %v1610
    %v1686 = vpop.f32.mrb[0].mxu0
    %v1687 = vadd.f32 %v1603, %v1686
    %v1688 = vpop.f32.mrb[0].mxu0
    %1689 = vmatprep.mubr.f32.mxu0 0.0
    %1690 = vmatmul.mubr.f32.gmra.mrb[0].mxu0 %v1613
    %v1691 = vpop.f32.mrb[0].mxu0
    %v1692 = vadd.f32 %v1603, %v1691
    %v1693 = vpop.f32.mrb[0].mxu0
    %1694 = vdwg.mxu0
    %v1695 = vxor.u32 %v1682, 2147483648
    %v1696 = vxor.u32 %v1687, 2147483648
    %v1697 = vxor.u32 %v1692, 2147483648
    %v1698 = vmul.f32 %v1695, 1.442695
    %v1699 = vpow.pop %v1698
    %v1700 = vmul.f32 %v1696, 1.442695
    %v1701 = vpow.pop %v1700
    %v1702 = vmul.f32 %v1697, 1.442695
    %v1703 = vpow.pop %v1702
    %v1704 = vadd.f32 %v1699, 1.0
    %v1705 = vadd.f32 %v1701, 1.0
    %v1706 = vadd.f32 %v1703, 1.0
    %v1707 = vrcp.pop %v1704
    %v1708 = vmul.f32 1.0, %v1707
    %v1709 = vrcp.pop %v1705
    %v1710 = vmul.f32 1.0, %v1709
    %v1711 = vrcp.pop %v1706
    %v1712 = vmul.f32 1.0, %v1711
    %v1713 = vmax.f32 %v1708, %v1710
    %v1714 = vmax.f32 %v1712, %v1713
    %vm1715 = vcmask 7168
    %1716 = vst.msk [vmem:[%s11] sm:$0xff] %vm1715, %v1714
    // Predicated region
    $region58: #{tpu_custom_call.1} parent=1 // pred_check
      _
    $region59: #{tpu_custom_call.1} parent=1 // pred_check_branch
      %1718 = sbr.rel (0) target = $region61
    $region60: #{tpu_custom_call.1} parent=1 // pred_region
      _
    $region61: #{tpu_custom_call.1} parent=1 // pred_fallthru
      _
    // Predicated region
    $region62: #{tpu_custom_call.1} parent=1 // pred_check
      _
    $region63: #{tpu_custom_call.1} parent=1 // pred_check_branch
      %1720 = sbr.rel (0) target = $region65
    $region64: #{tpu_custom_call.1} parent=1 // pred_region
      _
    $region65: #{tpu_custom_call.1} parent=1 // pred_fallthru
      _
    %1721 = vsyncpa [#allocation5], 1
    %1722 = vsyncpa [#allocation7], 1

</llo_original>
